<compile_context>
chip_gen: v7x
topology: tpu7x:2x2x1
jax: 0.10.0
libtpu: 0.0.40
codegen_flags: <defaults>
</compile_context>

<pallas_src>
import functools
import math

import jax
import jax.numpy as jnp
import numpy as np
from jax.experimental import pallas as pl
from jax.experimental.pallas import tpu as pltpu

_VMEM_LIMIT_BYTES = 64 * 1024 * 1024  # <= v7x physical VMEM; plenty on v5e/v6e.


def _pick_tile(dim, target, align):
    """Largest tile <= target dividing `dim` and aligned to `align`; falls back
    to the full dimension (always a legal BlockSpec block)."""
    if dim <= target:
        return dim
    for t in range(target, 0, -1):
        if dim % t == 0 and t % align == 0:
            return t
    return dim


# ----------------------------------------------------------------------------
# Tiled linear projection:  (M, K) @ (K, N) -> (M, N)
# ----------------------------------------------------------------------------
def _matmul_kernel(x_ref, w_ref, o_ref, acc_ref):
    @pl.when(pl.program_id(2) == 0)
    def _init():
        acc_ref[...] = jnp.zeros_like(acc_ref)

    acc_ref[...] += jnp.dot(x_ref[...], w_ref[...],
                            preferred_element_type=jnp.float32)

    @pl.when(pl.program_id(2) == pl.num_programs(2) - 1)
    def _store():
        o_ref[...] = acc_ref[...].astype(o_ref.dtype)


def pallas_linear(x, w, *, tm=256, tn=256, tk=512):
    """x: (M, K), w: (K, N) -> (M, N).  Tiled MXU matmul, f32 accumulation."""
    M, K = x.shape
    K2, N = w.shape
    assert K == K2
    tm = _pick_tile(M, tm, 8)     # sublane axis
    tn = _pick_tile(N, tn, 128)   # lane axis
    tk = _pick_tile(K, tk, 128)   # lane axis of x block / sublane of w block
    grid = (M // tm, N // tn, K // tk)
    return pl.pallas_call(
        _matmul_kernel,
        out_shape=jax.ShapeDtypeStruct((M, N), x.dtype),
        grid_spec=pltpu.PrefetchScalarGridSpec(
            num_scalar_prefetch=0,
            grid=grid,
            in_specs=[
                pl.BlockSpec((tm, tk), lambda i, j, k: (i, k)),
                pl.BlockSpec((tk, tn), lambda i, j, k: (k, j)),
            ],
            out_specs=pl.BlockSpec((tm, tn), lambda i, j, k: (i, j)),
            scratch_shapes=[pltpu.VMEM((tm, tn), jnp.float32)],
        ),
        compiler_params=pltpu.CompilerParams(
            dimension_semantics=("parallel", "parallel", "arbitrary"),
            vmem_limit_bytes=_VMEM_LIMIT_BYTES,
        ),
    )(x, w)


# ----------------------------------------------------------------------------
# Flash-style rotary causal attention.
# q/k/v/o: (B, T, H*Dh) packed head layout; cos/sin: (T, H*Dh) (head-tiled).
# Grid: (B, num_q_blocks, num_kv_blocks); kv axis is the (arbitrary) reduction.
# ----------------------------------------------------------------------------
def _flash_rope_attn_kernel(q_ref, k_ref, v_ref,
                            cos_q_ref, sin_q_ref, cos_k_ref, sin_k_ref,
                            o_ref,
                            qrot_ref, acc_ref, m_ref, l_ref,
                            *, num_heads, head_dim):
    H, Dh = num_heads, head_dim
    half = Dh // 2
    Tq = q_ref.shape[1]
    Tk = k_ref.shape[1]

    qi = pl.program_id(1)
    ki = pl.program_id(2)
    nk = pl.num_programs(2)

    q_start = qi * Tq
    k_start = ki * Tk

    def rotate_half_heads(x):
        # NeoX rotate_half applied per head, directly on the packed (T, H*Dh)
        # layout (static lane slices, no 3-D reshapes / transposes).
        pieces = []
        for h in range(H):
            base = h * Dh
            x1 = x[:, base:base + half]
            x2 = x[:, base + half:base + Dh]
            pieces.append(-x2)
            pieces.append(x1)
        return jnp.concatenate(pieces, axis=-1)

    def rope(x, cos, sin):
        return x * cos + rotate_half_heads(x) * sin

    @pl.when(ki == 0)
    def _init():
        m_ref[...] = jnp.full_like(m_ref, -jnp.inf)
        l_ref[...] = jnp.zeros_like(l_ref)
        acc_ref[...] = jnp.zeros_like(acc_ref)
        # RoPE(q) in f32, fold in 1/sqrt(Dh), cache for all kv steps.
        q = q_ref[0].astype(jnp.float32)
        q = rope(q, cos_q_ref[...], sin_q_ref[...]) * (1.0 / math.sqrt(Dh))
        qrot_ref[...] = q.astype(qrot_ref.dtype)

    # Skip KV blocks lying entirely above the causal diagonal.
    @pl.when(k_start <= q_start + Tq - 1)
    def _compute():
        k = rope(k_ref[0].astype(jnp.float32), cos_k_ref[...], sin_k_ref[...])
        k = k.astype(k_ref.dtype)          # MXU operand in input dtype
        v = v_ref[0]
        qr = qrot_ref[...]

        row = jax.lax.broadcasted_iota(jnp.int32, (Tq, Tk), 0) + q_start
        col = jax.lax.broadcasted_iota(jnp.int32, (Tq, Tk), 1) + k_start
        causal = col <= row

        for h in range(H):                  # static unroll over heads
            base = h * Dh
            s = jnp.dot(qr[:, base:base + Dh], k[:, base:base + Dh].T,
                        preferred_element_type=jnp.float32)       # (Tq, Tk)
            s = jnp.where(causal, s, -1e30)
            m_prev = m_ref[h]                                      # (Tq, 1)
            m_new = jnp.maximum(m_prev, jnp.max(s, axis=-1, keepdims=True))
            alpha = jnp.exp(m_prev - m_new)
            p = jnp.exp(s - m_new)                                 # unnormalised
            l_ref[h] = alpha * l_ref[h] + jnp.sum(p, axis=-1, keepdims=True)
            acc_ref[h] = alpha * acc_ref[h] + jnp.dot(
                p.astype(v.dtype), v[:, base:base + Dh],
                preferred_element_type=jnp.float32)
            m_ref[h] = m_new

    @pl.when(ki == nk - 1)
    def _finalize():
        inv = pl.reciprocal(l_ref[...], approx=True)               # (H, Tq, 1)
        out = jnp.concatenate([acc_ref[h] * inv[h] for h in range(H)], axis=-1)
        o_ref[0] = out.astype(o_ref.dtype)


def pallas_flash_rotary_attention(q, k, v, cos, sin, *, num_heads,
                                  q_block=128, kv_block=256):
    """q/k/v: (B, T, H*Dh); cos/sin: (T, H*Dh) -> (B, T, H*Dh)."""
    B, T, HD = q.shape
    H = num_heads
    Dh = HD // H
    assert H * Dh == HD and Dh % 2 == 0

    Tq = _pick_tile(T, q_block, 8)
    Tk = _pick_tile(T, kv_block, 8)
    grid = (B, T // Tq, T // Tk)

    kernel = functools.partial(_flash_rope_attn_kernel,
                               num_heads=H, head_dim=Dh)

    q_spec = pl.BlockSpec((1, Tq, HD), lambda b, i, j: (b, i, 0))
    kv_spec = pl.BlockSpec((1, Tk, HD), lambda b, i, j: (b, j, 0))
    tbl_q_spec = pl.BlockSpec((Tq, HD), lambda b, i, j: (i, 0))
    tbl_k_spec = pl.BlockSpec((Tk, HD), lambda b, i, j: (j, 0))

    return pl.pallas_call(
        kernel,
        out_shape=jax.ShapeDtypeStruct((B, T, HD), q.dtype),
        grid_spec=pltpu.PrefetchScalarGridSpec(
            num_scalar_prefetch=0,
            grid=grid,
            in_specs=[q_spec, kv_spec, kv_spec,
                      tbl_q_spec, tbl_q_spec, tbl_k_spec, tbl_k_spec],
            out_specs=pl.BlockSpec((1, Tq, HD), lambda b, i, j: (b, i, 0)),
            scratch_shapes=[
                pltpu.VMEM((Tq, HD), q.dtype),          # rotated + scaled q
                pltpu.VMEM((H, Tq, Dh), jnp.float32),   # output accumulator
                pltpu.VMEM((H, Tq, 1), jnp.float32),    # running max
                pltpu.VMEM((H, Tq, 1), jnp.float32),    # running denominator
            ],
        ),
        compiler_params=pltpu.CompilerParams(
            dimension_semantics=("parallel", "parallel", "arbitrary"),
            vmem_limit_bytes=_VMEM_LIMIT_BYTES,
        ),
    )(q, k, v, cos, sin, cos, sin)


# ----------------------------------------------------------------------------
# RoPE tables (hoistable: compute once, pass in) and full module forward.
# ----------------------------------------------------------------------------
def make_rope_tables(T, head_dim, num_heads, dtype=jnp.float32):
    """NeoX cos/sin tables, tiled across heads to (T, num_heads*head_dim)."""
    inv_freq = 1.0 / (10000.0 ** (jnp.arange(0, head_dim, 2, dtype=jnp.float32)
                                  / head_dim))
    pos = jnp.arange(T, dtype=jnp.float32)
    freqs = pos[:, None] * inv_freq[None, :]              # (T, Dh/2)
    emb = jnp.concatenate([freqs, freqs], axis=-1)        # (T, Dh)
    cos = jnp.tile(jnp.cos(emb), (1, num_heads)).astype(dtype)
    sin = jnp.tile(jnp.sin(emb), (1, num_heads)).astype(dtype)
    return cos, sin


def rotary_causal_self_attention(tokens, w_qkv, w_out, *, num_heads,
                                 rope_tables=None):
    """tokens: (B, T, C); w_qkv: (C, 3*H*Dh); w_out: (H*Dh, C)."""
    B, T, C = tokens.shape
    H = num_heads
    Dh = C // H
    HD = H * Dh

    # Per-projection weight slices (one-time view; keeps q/k/v as separate
    # lane-dense (B, T, H*Dh) arrays with no HBM concat/split round trips).
    w_q = w_qkv[:, 0 * HD:1 * HD]
    w_k = w_qkv[:, 1 * HD:2 * HD]
    w_v = w_qkv[:, 2 * HD:3 * HD]

    x2d = tokens.reshape(B * T, C)
    q = pallas_linear(x2d, w_q).reshape(B, T, HD)
    k = pallas_linear(x2d, w_k).reshape(B, T, HD)
    v = pallas_linear(x2d, w_v).reshape(B, T, HD)

    if rope_tables is None:
        rope_tables = make_rope_tables(T, Dh, H, dtype=jnp.float32)
    cos, sin = rope_tables

    o = pallas_flash_rotary_attention(q, k, v, cos, sin, num_heads=H)

    out = pallas_linear(o.reshape(B * T, HD), w_out).reshape(B, T, C)
    # TODO(synk): training-mode dropout (drop_rate > 0) not applied (inference).
    return out


# ----------------------------------------------------------------------------
# Pure-JAX reference (same math) for a correctness self-check.
# ----------------------------------------------------------------------------
def _reference_forward(tokens, w_qkv, w_out, num_heads):
    B, T, C = tokens.shape
    H = num_heads
    Dh = C // H
    qkv = tokens @ w_qkv
    q, k, v = jnp.split(qkv, 3, axis=-1)

    def split_heads(x):
        return x.reshape(B, T, H, Dh).transpose(0, 2, 1, 3)   # (B, H, T, Dh)

    q, k, v = split_heads(q), split_heads(k), split_heads(v)

    inv_freq = 1.0 / (10000.0 ** (jnp.arange(0, Dh, 2, dtype=jnp.float32) / Dh))
    pos = jnp.arange(T, dtype=jnp.float32)
    freqs = pos[:, None] * inv_freq[None, :]
    emb = jnp.concatenate([freqs, freqs], axis=-1)
    cos, sin = jnp.cos(emb), jnp.sin(emb)

    def rope(x):
        x1, x2 = x[..., :Dh // 2], x[..., Dh // 2:]
        rot = jnp.concatenate([-x2, x1], axis=-1)
        return x * cos + rot * sin

    q, k = rope(q), rope(k)
    s = jnp.einsum('bhqd,bhkd->bhqk', q, k) * (Dh ** -0.5)
    mask = jnp.tril(jnp.ones((T, T), dtype=bool))
    s = jnp.where(mask, s, -jnp.inf)
    p = jax.nn.softmax(s, axis=-1)
    o = jnp.einsum('bhqk,bhkd->bhqd', p, v)
    o = o.transpose(0, 2, 1, 3).reshape(B, T, H * Dh)
    return o @ w_out


if __name__ == "__main__":
    # Small shapes consistent with the module: B=2, T=16, embed_dim=32, heads=4
    B, T, C, H = 2, 16, 32, 4
    Dh = C // H

    key = jax.random.PRNGKey(0)
    k_tok, k_qkv, k_out = jax.random.split(key, 3)

    tokens = jax.random.normal(k_tok, (B, T, C), dtype=jnp.float32)

    # nn.Linear-style init (uniform +-1/sqrt(fan_in)), stored transposed.
    bound_qkv = 1.0 / math.sqrt(C)
    w_qkv = jax.random.uniform(k_qkv, (C, 3 * H * Dh), jnp.float32,
                               -bound_qkv, bound_qkv)
    bound_out = 1.0 / math.sqrt(H * Dh)
    w_out = jax.random.uniform(k_out, (H * Dh, C), jnp.float32,
                               -bound_out, bound_out)

    # Hoisted RoPE tables (computed once, reused across calls).
    rope_tables = make_rope_tables(T, Dh, H, dtype=jnp.float32)

    fwd = jax.jit(functools.partial(rotary_causal_self_attention, num_heads=H))
    out = fwd(tokens, w_qkv, w_out, rope_tables=rope_tables)
    jax.block_until_ready(out)
    assert out.shape == (B, T, C)

    ref = _reference_forward(tokens, w_qkv, w_out, H)
    np.testing.assert_allclose(np.asarray(out), np.asarray(ref),
                               rtol=2e-2, atol=2e-2)

    print("KERNEL_OK")
</pallas_src>

<mosaic_0001>
module attributes {stable_mosaic.version = 11 : i64} {
  func.func @_matmul_kernel(%arg0: i32, %arg1: i32, %arg2: i32, %arg3: memref<32x32xf32, #tpu.memory_space<vmem>>, %arg4: memref<32x32xf32, #tpu.memory_space<vmem>>, %arg5: memref<32x32xf32, #tpu.memory_space<vmem>>, %arg6: memref<32x32xf32, #tpu.memory_space<vmem>>) attributes {dimension_semantics = [#tpu.dimension_semantics<parallel>, #tpu.dimension_semantics<parallel>, #tpu.dimension_semantics<arbitrary>], iteration_bounds = array<i64: 1, 1, 1>, scalar_prefetch = 0 : i64, scratch_operands = 1 : i64, tpu.core_type = #tpu.core_type<tc>, window_params = [{transform_indices = @transform_0, window_bounds = array<i64: 32, 32>}, {transform_indices = @transform_1, window_bounds = array<i64: 32, 32>}, {transform_indices = @transform_2, window_bounds = array<i64: 32, 32>}]} {
    %c0_i32 = arith.constant 0 : i32
    %0 = arith.cmpi eq, %arg2, %c0_i32 : i32
    %1 = arith.extui %0 : i1 to i32
    %c0_i32_0 = arith.constant 0 : i32
    %2 = arith.cmpi ne, %1, %c0_i32_0 : i32
    scf.if %2 {
      %cst_10 = arith.constant 0.000000e+00 : f32
      %12 = vector.broadcast %cst_10 : f32 to vector<32x32xf32>
      %c0_11 = arith.constant 0 : index
      %c0_12 = arith.constant 0 : index
      %13 = vector.load %arg6[%c0_11, %c0_12] : memref<32x32xf32, #tpu.memory_space<vmem>>, vector<32x32xf32>
      tpu.vector_store %arg6[%c0_11, %c0_12], %12 {strides = array<i32>} : memref<32x32xf32, #tpu.memory_space<vmem>>, vector<32x32xf32>,
    } else {
    }
    %c0 = arith.constant 0 : index
    %c0_1 = arith.constant 0 : index
    %3 = vector.load %arg6[%c0, %c0_1] : memref<32x32xf32, #tpu.memory_space<vmem>>, vector<32x32xf32>
    %c0_2 = arith.constant 0 : index
    %c0_3 = arith.constant 0 : index
    %4 = vector.load %arg3[%c0_2, %c0_3] : memref<32x32xf32, #tpu.memory_space<vmem>>, vector<32x32xf32>
    %c0_4 = arith.constant 0 : index
    %c0_5 = arith.constant 0 : index
    %5 = vector.load %arg4[%c0_4, %c0_5] : memref<32x32xf32, #tpu.memory_space<vmem>>, vector<32x32xf32>
    %cst = arith.constant dense<0.000000e+00> : vector<32x32xf32>
    %6 = tpu.matmul %4, %5, %cst {dimension_numbers = #tpu.dot_dimension_numbers<[1], [0], [0], [1], [0, 0, 1, 1], [], []>} : vector<32x32xf32>, vector<32x32xf32>, vector<32x32xf32> -> vector<32x32xf32>
    %7 = arith.addf %3, %6 : vector<32x32xf32>
    %c0_6 = arith.constant 0 : index
    %c0_7 = arith.constant 0 : index
    %8 = vector.load %arg6[%c0_6, %c0_7] : memref<32x32xf32, #tpu.memory_space<vmem>>, vector<32x32xf32>
    tpu.vector_store %arg6[%c0_6, %c0_7], %7 {strides = array<i32>} : memref<32x32xf32, #tpu.memory_space<vmem>>, vector<32x32xf32>,
    %c0_i32_8 = arith.constant 0 : i32
    %9 = arith.cmpi eq, %arg2, %c0_i32_8 : i32
    %10 = arith.extui %9 : i1 to i32
    %c0_i32_9 = arith.constant 0 : i32
    %11 = arith.cmpi ne, %10, %c0_i32_9 : i32
    scf.if %11 {
      %c0_10 = arith.constant 0 : index
      %c0_11 = arith.constant 0 : index
      %12 = vector.load %arg6[%c0_10, %c0_11] : memref<32x32xf32, #tpu.memory_space<vmem>>, vector<32x32xf32>
      %c0_12 = arith.constant 0 : index
      %c0_13 = arith.constant 0 : index
      %13 = vector.load %arg5[%c0_12, %c0_13] : memref<32x32xf32, #tpu.memory_space<vmem>>, vector<32x32xf32>
      tpu.vector_store %arg5[%c0_12, %c0_13], %12 {strides = array<i32>} : memref<32x32xf32, #tpu.memory_space<vmem>>, vector<32x32xf32>,
    } else {
    }
    return
  }
  func.func @transform_0(%arg0: i32, %arg1: i32, %arg2: i32) -> (i32, i32) {
    %c0_i32 = arith.constant 0 : i32
    return %arg0, %arg2 : i32, i32
  }
  func.func @transform_1(%arg0: i32, %arg1: i32, %arg2: i32) -> (i32, i32) {
    %c0_i32 = arith.constant 0 : i32
    return %arg2, %arg1 : i32, i32
  }
  func.func @transform_2(%arg0: i32, %arg1: i32, %arg2: i32) -> (i32, i32) {
    %c0_i32 = arith.constant 0 : i32
    return %arg0, %arg1 : i32, i32
  }
}

module attributes {stable_mosaic.version = 11 : i64} {
  func.func @_flash_rope_attn_kernel(%arg0: i32, %arg1: i32, %arg2: i32, %arg3: memref<1x16x32xf32, #tpu.memory_space<vmem>>, %arg4: memref<1x16x32xf32, #tpu.memory_space<vmem>>, %arg5: memref<1x16x32xf32, #tpu.memory_space<vmem>>, %arg6: memref<16x32xf32, #tpu.memory_space<vmem>>, %arg7: memref<16x32xf32, #tpu.memory_space<vmem>>, %arg8: memref<16x32xf32, #tpu.memory_space<vmem>>, %arg9: memref<16x32xf32, #tpu.memory_space<vmem>>, %arg10: memref<1x16x32xf32, #tpu.memory_space<vmem>>, %arg11: memref<16x32xf32, #tpu.memory_space<vmem>>, %arg12: memref<4x16x8xf32, #tpu.memory_space<vmem>>, %arg13: memref<4x16x1xf32, #tpu.memory_space<vmem>>, %arg14: memref<4x16x1xf32, #tpu.memory_space<vmem>>) attributes {dimension_semantics = [#tpu.dimension_semantics<parallel>, #tpu.dimension_semantics<parallel>, #tpu.dimension_semantics<arbitrary>], iteration_bounds = array<i64: 2, 1, 1>, scalar_prefetch = 0 : i64, scratch_operands = 4 : i64, tpu.core_type = #tpu.core_type<tc>, window_params = [{transform_indices = @transform_0, window_bounds = array<i64: 1, 16, 32>}, {transform_indices = @transform_1, window_bounds = array<i64: 1, 16, 32>}, {transform_indices = @transform_2, window_bounds = array<i64: 1, 16, 32>}, {transform_indices = @transform_3, window_bounds = array<i64: 16, 32>}, {transform_indices = @transform_4, window_bounds = array<i64: 16, 32>}, {transform_indices = @transform_5, window_bounds = array<i64: 16, 32>}, {transform_indices = @transform_6, window_bounds = array<i64: 16, 32>}, {transform_indices = @transform_7, window_bounds = array<i64: 1, 16, 32>}]} {
    %c16_i32 = arith.constant 16 : i32
    %0 = arith.muli %arg1, %c16_i32 : i32
    %c16_i32_0 = arith.constant 16 : i32
    %1 = arith.muli %arg2, %c16_i32_0 : i32
    %c0_i32 = arith.constant 0 : i32
    %2 = arith.cmpi eq, %arg2, %c0_i32 : i32
    %3 = arith.extui %2 : i1 to i32
    %c0_i32_1 = arith.constant 0 : i32
    %4 = arith.cmpi ne, %3, %c0_i32_1 : i32
    scf.if %4 {
      %cst = arith.constant 0xFF800000 : f32
      %13 = vector.broadcast %cst : f32 to vector<4x16x1xf32>
      %c0 = arith.constant 0 : index
      %c0_6 = arith.constant 0 : index
      %c0_7 = arith.constant 0 : index
      %14 = vector.load %arg13[%c0, %c0_6, %c0_7] : memref<4x16x1xf32, #tpu.memory_space<vmem>>, vector<4x16x1xf32>
      tpu.vector_store %arg13[%c0, %c0_6, %c0_7], %13 {strides = array<i32>} : memref<4x16x1xf32, #tpu.memory_space<vmem>>, vector<4x16x1xf32>,
      %cst_8 = arith.constant 0.000000e+00 : f32
      %15 = vector.broadcast %cst_8 : f32 to vector<4x16x1xf32>
      %c0_9 = arith.constant 0 : index
      %c0_10 = arith.constant 0 : index
      %c0_11 = arith.constant 0 : index
      %16 = vector.load %arg14[%c0_9, %c0_10, %c0_11] : memref<4x16x1xf32, #tpu.memory_space<vmem>>, vector<4x16x1xf32>
      tpu.vector_store %arg14[%c0_9, %c0_10, %c0_11], %15 {strides = array<i32>} : memref<4x16x1xf32, #tpu.memory_space<vmem>>, vector<4x16x1xf32>,
      %cst_12 = arith.constant 0.000000e+00 : f32
      %17 = vector.broadcast %cst_12 : f32 to vector<4x16x8xf32>
      %c0_13 = arith.constant 0 : index
      %c0_14 = arith.constant 0 : index
      %c0_15 = arith.constant 0 : index
      %18 = vector.load %arg12[%c0_13, %c0_14, %c0_15] : memref<4x16x8xf32, #tpu.memory_space<vmem>>, vector<4x16x8xf32>
      tpu.vector_store %arg12[%c0_13, %c0_14, %c0_15], %17 {strides = array<i32>} : memref<4x16x8xf32, #tpu.memory_space<vmem>>, vector<4x16x8xf32>,
      %c0_16 = arith.constant 0 : index
      %c0_17 = arith.constant 0 : index
      %c0_18 = arith.constant 0 : index
      %19 = vector.load %arg3[%c0_16, %c0_17, %c0_18] : memref<1x16x32xf32, #tpu.memory_space<vmem>>, vector<1x16x32xf32>
      %20 = vector.shape_cast %19 : vector<1x16x32xf32> to vector<16x32xf32>
      %c0_19 = arith.constant 0 : index
      %c0_20 = arith.constant 0 : index
      %21 = vector.load %arg6[%c0_19, %c0_20] : memref<16x32xf32, #tpu.memory_space<vmem>>, vector<16x32xf32>
      %c0_21 = arith.constant 0 : index
      %c0_22 = arith.constant 0 : index
      %22 = vector.load %arg7[%c0_21, %c0_22] : memref<16x32xf32, #tpu.memory_space<vmem>>, vector<16x32xf32>
      %23 = arith.mulf %20, %21 : vector<16x32xf32>
      %24 = vector.extract_strided_slice %20 {offsets = [0, 0], sizes = [16, 4], strides = [1, 1]} : vector<16x32xf32> to vector<16x4xf32>
      %25 = vector.extract_strided_slice %20 {offsets = [0, 4], sizes = [16, 4], strides = [1, 1]} : vector<16x32xf32> to vector<16x4xf32>
      %cst_23 = arith.constant 0.000000e+00 : f32
      %26 = vector.broadcast %cst_23 : f32 to vector<16x4xf32>
      %27 = arith.subf %26, %25 : vector<16x4xf32>
      %28 = vector.extract_strided_slice %20 {offsets = [0, 8], sizes = [16, 4], strides = [1, 1]} : vector<16x32xf32> to vector<16x4xf32>
      %29 = vector.extract_strided_slice %20 {offsets = [0, 12], sizes = [16, 4], strides = [1, 1]} : vector<16x32xf32> to vector<16x4xf32>
      %cst_24 = arith.constant 0.000000e+00 : f32
      %30 = vector.broadcast %cst_24 : f32 to vector<16x4xf32>
      %31 = arith.subf %30, %29 : vector<16x4xf32>
      %32 = vector.extract_strided_slice %20 {offsets = [0, 16], sizes = [16, 4], strides = [1, 1]} : vector<16x32xf32> to vector<16x4xf32>
      %33 = vector.extract_strided_slice %20 {offsets = [0, 20], sizes = [16, 4], strides = [1, 1]} : vector<16x32xf32> to vector<16x4xf32>
      %cst_25 = arith.constant 0.000000e+00 : f32
      %34 = vector.broadcast %cst_25 : f32 to vector<16x4xf32>
      %35 = arith.subf %34, %33 : vector<16x4xf32>
      %36 = vector.extract_strided_slice %20 {offsets = [0, 24], sizes = [16, 4], strides = [1, 1]} : vector<16x32xf32> to vector<16x4xf32>
      %37 = vector.extract_strided_slice %20 {offsets = [0, 28], sizes = [16, 4], strides = [1, 1]} : vector<16x32xf32> to vector<16x4xf32>
      %cst_26 = arith.constant 0.000000e+00 : f32
      %38 = vector.broadcast %cst_26 : f32 to vector<16x4xf32>
      %39 = arith.subf %38, %37 : vector<16x4xf32>
      %40 = tpu.concatenate %27, %24, %31, %28, %35, %32, %39, %36 in 1 : vector<16x4xf32>, vector<16x4xf32>, vector<16x4xf32>, vector<16x4xf32>, vector<16x4xf32>, vector<16x4xf32>, vector<16x4xf32>, vector<16x4xf32> -> vector<16x32xf32>
      %41 = arith.mulf %40, %22 : vector<16x32xf32>
      %42 = arith.addf %23, %41 : vector<16x32xf32>
      %cst_27 = arith.constant 0.353553385 : f32
      %43 = vector.broadcast %cst_27 : f32 to vector<16x32xf32>
      %44 = arith.mulf %42, %43 : vector<16x32xf32>
      %c0_28 = arith.constant 0 : index
      %c0_29 = arith.constant 0 : index
      %45 = vector.load %arg11[%c0_28, %c0_29] : memref<16x32xf32, #tpu.memory_space<vmem>>, vector<16x32xf32>
      tpu.vector_store %arg11[%c0_28, %c0_29], %44 {strides = array<i32>} : memref<16x32xf32, #tpu.memory_space<vmem>>, vector<16x32xf32>,
    } else {
    }
    %c16_i32_2 = arith.constant 16 : i32
    %5 = arith.addi %0, %c16_i32_2 : i32
    %c1_i32 = arith.constant 1 : i32
    %6 = arith.subi %5, %c1_i32 : i32
    %7 = arith.cmpi sle, %1, %6 : i32
    %8 = arith.extui %7 : i1 to i32
    %c0_i32_3 = arith.constant 0 : i32
    %9 = arith.cmpi ne, %8, %c0_i32_3 : i32
    scf.if %9 {
      %c0 = arith.constant 0 : index
      %c0_6 = arith.constant 0 : index
      %c0_7 = arith.constant 0 : index
      %13 = vector.load %arg4[%c0, %c0_6, %c0_7] : memref<1x16x32xf32, #tpu.memory_space<vmem>>, vector<1x16x32xf32>
      %14 = vector.shape_cast %13 : vector<1x16x32xf32> to vector<16x32xf32>
      %c0_8 = arith.constant 0 : index
      %c0_9 = arith.constant 0 : index
      %15 = vector.load %arg8[%c0_8, %c0_9] : memref<16x32xf32, #tpu.memory_space<vmem>>, vector<16x32xf32>
      %c0_10 = arith.constant 0 : index
      %c0_11 = arith.constant 0 : index
      %16 = vector.load %arg9[%c0_10, %c0_11] : memref<16x32xf32, #tpu.memory_space<vmem>>, vector<16x32xf32>
      %17 = arith.mulf %14, %15 : vector<16x32xf32>
      %18 = vector.extract_strided_slice %14 {offsets = [0, 0], sizes = [16, 4], strides = [1, 1]} : vector<16x32xf32> to vector<16x4xf32>
      %19 = vector.extract_strided_slice %14 {offsets = [0, 4], sizes = [16, 4], strides = [1, 1]} : vector<16x32xf32> to vector<16x4xf32>
      %cst = arith.constant 0.000000e+00 : f32
      %20 = vector.broadcast %cst : f32 to vector<16x4xf32>
      %21 = arith.subf %20, %19 : vector<16x4xf32>
      %22 = vector.extract_strided_slice %14 {offsets = [0, 8], sizes = [16, 4], strides = [1, 1]} : vector<16x32xf32> to vector<16x4xf32>
      %23 = vector.extract_strided_slice %14 {offsets = [0, 12], sizes = [16, 4], strides = [1, 1]} : vector<16x32xf32> to vector<16x4xf32>
      %cst_12 = arith.constant 0.000000e+00 : f32
      %24 = vector.broadcast %cst_12 : f32 to vector<16x4xf32>
      %25 = arith.subf %24, %23 : vector<16x4xf32>
      %26 = vector.extract_strided_slice %14 {offsets = [0, 16], sizes = [16, 4], strides = [1, 1]} : vector<16x32xf32> to vector<16x4xf32>
      %27 = vector.extract_strided_slice %14 {offsets = [0, 20], sizes = [16, 4], strides = [1, 1]} : vector<16x32xf32> to vector<16x4xf32>
      %cst_13 = arith.constant 0.000000e+00 : f32
      %28 = vector.broadcast %cst_13 : f32 to vector<16x4xf32>
      %29 = arith.subf %28, %27 : vector<16x4xf32>
      %30 = vector.extract_strided_slice %14 {offsets = [0, 24], sizes = [16, 4], strides = [1, 1]} : vector<16x32xf32> to vector<16x4xf32>
      %31 = vector.extract_strided_slice %14 {offsets = [0, 28], sizes = [16, 4], strides = [1, 1]} : vector<16x32xf32> to vector<16x4xf32>
      %cst_14 = arith.constant 0.000000e+00 : f32
      %32 = vector.broadcast %cst_14 : f32 to vector<16x4xf32>
      %33 = arith.subf %32, %31 : vector<16x4xf32>
      %34 = tpu.concatenate %21, %18, %25, %22, %29, %26, %33, %30 in 1 : vector<16x4xf32>, vector<16x4xf32>, vector<16x4xf32>, vector<16x4xf32>, vector<16x4xf32>, vector<16x4xf32>, vector<16x4xf32>, vector<16x4xf32> -> vector<16x32xf32>
      %35 = arith.mulf %34, %16 : vector<16x32xf32>
      %36 = arith.addf %17, %35 : vector<16x32xf32>
      %c0_15 = arith.constant 0 : index
      %c0_16 = arith.constant 0 : index
      %c0_17 = arith.constant 0 : index
      %37 = vector.load %arg5[%c0_15, %c0_16, %c0_17] : memref<1x16x32xf32, #tpu.memory_space<vmem>>, vector<1x16x32xf32>
      %38 = vector.shape_cast %37 : vector<1x16x32xf32> to vector<16x32xf32>
      %c0_18 = arith.constant 0 : index
      %c0_19 = arith.constant 0 : index
      %39 = vector.load %arg11[%c0_18, %c0_19] : memref<16x32xf32, #tpu.memory_space<vmem>>, vector<16x32xf32>
      %40 = tpu.iota {dimensions = array<i32: 0>} : vector<16x16xi32>
      %41 = vector.broadcast %0 : i32 to vector<16x16xi32>
      %42 = arith.addi %40, %41 : vector<16x16xi32>
      %43 = tpu.iota {dimensions = array<i32: 1>} : vector<16x16xi32>
      %44 = vector.broadcast %1 : i32 to vector<16x16xi32>
      %45 = arith.addi %43, %44 : vector<16x16xi32>
      %46 = arith.cmpi sle, %45, %42 : vector<16x16xi32>
      %47 = vector.extract_strided_slice %39 {offsets = [0, 0], sizes = [16, 8], strides = [1, 1]} : vector<16x32xf32> to vector<16x8xf32>
      %48 = vector.extract_strided_slice %36 {offsets = [0, 0], sizes = [16, 8], strides = [1, 1]} : vector<16x32xf32> to vector<16x8xf32>
      %49 = tpu.transpose %48, [1, 0] : vector<16x8xf32> -> vector<8x16xf32>
      %cst_20 = arith.constant dense<0.000000e+00> : vector<16x16xf32>
      %50 = tpu.matmul %47, %49, %cst_20 {dimension_numbers = #tpu.dot_dimension_numbers<[1], [0], [0], [1], [0, 0, 1, 1], [], []>} : vector<16x8xf32>, vector<8x16xf32>, vector<16x16xf32> -> vector<16x16xf32>
      %cst_21 = arith.constant -1.000000e+30 : f32
      %51 = vector.broadcast %cst_21 : f32 to vector<16x16xf32>
      %52 = arith.select %46, %50, %51 : vector<16x16xi1>, vector<16x16xf32>
      %c0_22 = arith.constant 0 : index
      %c0_23 = arith.constant 0 : index
      %c0_24 = arith.constant 0 : index
      %53 = vector.load %arg13[%c0_22, %c0_23, %c0_24] : memref<4x16x1xf32, #tpu.memory_space<vmem>>, vector<1x16x1xf32>
      %54 = vector.shape_cast %53 : vector<1x16x1xf32> to vector<16x1xf32>
      %cst_25 = arith.constant dense<0xFF800000> : vector<16xf32>
      %55 = vector.multi_reduction <maximumf>, %52, %cst_25 [1] : vector<16x16xf32> to vector<16xf32>
      %56 = vector.shape_cast %55 : vector<16xf32> to vector<16x1xf32>
      %57 = arith.maximumf %54, %56 : vector<16x1xf32>
      %58 = arith.subf %54, %57 : vector<16x1xf32>
      %59 = math.exp %58 : vector<16x1xf32>
      %60 = vector.broadcast %57 : vector<16x1xf32> to vector<16x16xf32>
      %61 = arith.subf %52, %60 : vector<16x16xf32>
      %62 = math.exp %61 : vector<16x16xf32>
      %c0_26 = arith.constant 0 : index
      %c0_27 = arith.constant 0 : index
      %c0_28 = arith.constant 0 : index
      %63 = vector.load %arg14[%c0_26, %c0_27, %c0_28] : memref<4x16x1xf32, #tpu.memory_space<vmem>>, vector<1x16x1xf32>
      %64 = vector.shape_cast %63 : vector<1x16x1xf32> to vector<16x1xf32>
      %65 = arith.mulf %59, %64 : vector<16x1xf32>
      %cst_29 = arith.constant dense<0.000000e+00> : vector<16xf32>
      %66 = vector.multi_reduction <add>, %62, %cst_29 [1] : vector<16x16xf32> to vector<16xf32>
      %67 = vector.shape_cast %66 : vector<16xf32> to vector<16x1xf32>
      %68 = arith.addf %65, %67 : vector<16x1xf32>
      %c0_30 = arith.constant 0 : index
      %c0_31 = arith.constant 0 : index
      %c0_32 = arith.constant 0 : index
      %69 = vector.load %arg14[%c0_30, %c0_31, %c0_32] : memref<4x16x1xf32, #tpu.memory_space<vmem>>, vector<1x16x1xf32>
      %70 = vector.shape_cast %69 : vector<1x16x1xf32> to vector<16x1xf32>
      %71 = vector.shape_cast %68 : vector<16x1xf32> to vector<1x16x1xf32>
      tpu.vector_store %arg14[%c0_30, %c0_31, %c0_32], %71 {strides = array<i32>} : memref<4x16x1xf32, #tpu.memory_space<vmem>>, vector<1x16x1xf32>,
      %c0_33 = arith.constant 0 : index
      %c0_34 = arith.constant 0 : index
      %c0_35 = arith.constant 0 : index
      %72 = vector.load %arg12[%c0_33, %c0_34, %c0_35] : memref<4x16x8xf32, #tpu.memory_space<vmem>>, vector<1x16x8xf32>
      %73 = vector.shape_cast %72 : vector<1x16x8xf32> to vector<16x8xf32>
      %74 = vector.broadcast %59 : vector<16x1xf32> to vector<16x8xf32>
      %75 = arith.mulf %74, %73 : vector<16x8xf32>
      %76 = vector.extract_strided_slice %38 {offsets = [0, 0], sizes = [16, 8], strides = [1, 1]} : vector<16x32xf32> to vector<16x8xf32>
      %cst_36 = arith.constant dense<0.000000e+00> : vector<16x8xf32>
      %77 = tpu.matmul %62, %76, %cst_36 {dimension_numbers = #tpu.dot_dimension_numbers<[1], [0], [0], [1], [0, 0, 1, 1], [], []>} : vector<16x16xf32>, vector<16x8xf32>, vector<16x8xf32> -> vector<16x8xf32>
      %78 = arith.addf %75, %77 : vector<16x8xf32>
      %c0_37 = arith.constant 0 : index
      %c0_38 = arith.constant 0 : index
      %c0_39 = arith.constant 0 : index
      %79 = vector.load %arg12[%c0_37, %c0_38, %c0_39] : memref<4x16x8xf32, #tpu.memory_space<vmem>>, vector<1x16x8xf32>
      %80 = vector.shape_cast %79 : vector<1x16x8xf32> to vector<16x8xf32>
      %81 = vector.shape_cast %78 : vector<16x8xf32> to vector<1x16x8xf32>
      tpu.vector_store %arg12[%c0_37, %c0_38, %c0_39], %81 {strides = array<i32>} : memref<4x16x8xf32, #tpu.memory_space<vmem>>, vector<1x16x8xf32>,
      %c0_40 = arith.constant 0 : index
      %c0_41 = arith.constant 0 : index
      %c0_42 = arith.constant 0 : index
      %82 = vector.load %arg13[%c0_40, %c0_41, %c0_42] : memref<4x16x1xf32, #tpu.memory_space<vmem>>, vector<1x16x1xf32>
      %83 = vector.shape_cast %82 : vector<1x16x1xf32> to vector<16x1xf32>
      %84 = vector.shape_cast %57 : vector<16x1xf32> to vector<1x16x1xf32>
      tpu.vector_store %arg13[%c0_40, %c0_41, %c0_42], %84 {strides = array<i32>} : memref<4x16x1xf32, #tpu.memory_space<vmem>>, vector<1x16x1xf32>,
      %85 = vector.extract_strided_slice %39 {offsets = [0, 8], sizes = [16, 8], strides = [1, 1]} : vector<16x32xf32> to vector<16x8xf32>
      %86 = vector.extract_strided_slice %36 {offsets = [0, 8], sizes = [16, 8], strides = [1, 1]} : vector<16x32xf32> to vector<16x8xf32>
      %87 = tpu.transpose %86, [1, 0] : vector<16x8xf32> -> vector<8x16xf32>
      %cst_43 = arith.constant dense<0.000000e+00> : vector<16x16xf32>
      %88 = tpu.matmul %85, %87, %cst_43 {dimension_numbers = #tpu.dot_dimension_numbers<[1], [0], [0], [1], [0, 0, 1, 1], [], []>} : vector<16x8xf32>, vector<8x16xf32>, vector<16x16xf32> -> vector<16x16xf32>
      %cst_44 = arith.constant -1.000000e+30 : f32
      %89 = vector.broadcast %cst_44 : f32 to vector<16x16xf32>
      %90 = arith.select %46, %88, %89 : vector<16x16xi1>, vector<16x16xf32>
      %c1 = arith.constant 1 : index
      %c0_45 = arith.constant 0 : index
      %c0_46 = arith.constant 0 : index
      %91 = vector.load %arg13[%c1, %c0_45, %c0_46] : memref<4x16x1xf32, #tpu.memory_space<vmem>>, vector<1x16x1xf32>
      %92 = vector.shape_cast %91 : vector<1x16x1xf32> to vector<16x1xf32>
      %cst_47 = arith.constant dense<0xFF800000> : vector<16xf32>
      %93 = vector.multi_reduction <maximumf>, %90, %cst_47 [1] : vector<16x16xf32> to vector<16xf32>
      %94 = vector.shape_cast %93 : vector<16xf32> to vector<16x1xf32>
      %95 = arith.maximumf %92, %94 : vector<16x1xf32>
      %96 = arith.subf %92, %95 : vector<16x1xf32>
      %97 = math.exp %96 : vector<16x1xf32>
      %98 = vector.broadcast %95 : vector<16x1xf32> to vector<16x16xf32>
      %99 = arith.subf %90, %98 : vector<16x16xf32>
      %100 = math.exp %99 : vector<16x16xf32>
      %c1_48 = arith.constant 1 : index
      %c0_49 = arith.constant 0 : index
      %c0_50 = arith.constant 0 : index
      %101 = vector.load %arg14[%c1_48, %c0_49, %c0_50] : memref<4x16x1xf32, #tpu.memory_space<vmem>>, vector<1x16x1xf32>
      %102 = vector.shape_cast %101 : vector<1x16x1xf32> to vector<16x1xf32>
      %103 = arith.mulf %97, %102 : vector<16x1xf32>
      %cst_51 = arith.constant dense<0.000000e+00> : vector<16xf32>
      %104 = vector.multi_reduction <add>, %100, %cst_51 [1] : vector<16x16xf32> to vector<16xf32>
      %105 = vector.shape_cast %104 : vector<16xf32> to vector<16x1xf32>
      %106 = arith.addf %103, %105 : vector<16x1xf32>
      %c1_52 = arith.constant 1 : index
      %c0_53 = arith.constant 0 : index
      %c0_54 = arith.constant 0 : index
      %107 = vector.load %arg14[%c1_52, %c0_53, %c0_54] : memref<4x16x1xf32, #tpu.memory_space<vmem>>, vector<1x16x1xf32>
      %108 = vector.shape_cast %107 : vector<1x16x1xf32> to vector<16x1xf32>
      %109 = vector.shape_cast %106 : vector<16x1xf32> to vector<1x16x1xf32>
      tpu.vector_store %arg14[%c1_52, %c0_53, %c0_54], %109 {strides = array<i32>} : memref<4x16x1xf32, #tpu.memory_space<vmem>>, vector<1x16x1xf32>,
      %c1_55 = arith.constant 1 : index
      %c0_56 = arith.constant 0 : index
      %c0_57 = arith.constant 0 : index
      %110 = vector.load %arg12[%c1_55, %c0_56, %c0_57] : memref<4x16x8xf32, #tpu.memory_space<vmem>>, vector<1x16x8xf32>
      %111 = vector.shape_cast %110 : vector<1x16x8xf32> to vector<16x8xf32>
      %112 = vector.broadcast %97 : vector<16x1xf32> to vector<16x8xf32>
      %113 = arith.mulf %112, %111 : vector<16x8xf32>
      %114 = vector.extract_strided_slice %38 {offsets = [0, 8], sizes = [16, 8], strides = [1, 1]} : vector<16x32xf32> to vector<16x8xf32>
      %cst_58 = arith.constant dense<0.000000e+00> : vector<16x8xf32>
      %115 = tpu.matmul %100, %114, %cst_58 {dimension_numbers = #tpu.dot_dimension_numbers<[1], [0], [0], [1], [0, 0, 1, 1], [], []>} : vector<16x16xf32>, vector<16x8xf32>, vector<16x8xf32> -> vector<16x8xf32>
      %116 = arith.addf %113, %115 : vector<16x8xf32>
      %c1_59 = arith.constant 1 : index
      %c0_60 = arith.constant 0 : index
      %c0_61 = arith.constant 0 : index
      %117 = vector.load %arg12[%c1_59, %c0_60, %c0_61] : memref<4x16x8xf32, #tpu.memory_space<vmem>>, vector<1x16x8xf32>
      %118 = vector.shape_cast %117 : vector<1x16x8xf32> to vector<16x8xf32>
      %119 = vector.shape_cast %116 : vector<16x8xf32> to vector<1x16x8xf32>
      tpu.vector_store %arg12[%c1_59, %c0_60, %c0_61], %119 {strides = array<i32>} : memref<4x16x8xf32, #tpu.memory_space<vmem>>, vector<1x16x8xf32>,
      %c1_62 = arith.constant 1 : index
      %c0_63 = arith.constant 0 : index
      %c0_64 = arith.constant 0 : index
      %120 = vector.load %arg13[%c1_62, %c0_63, %c0_64] : memref<4x16x1xf32, #tpu.memory_space<vmem>>, vector<1x16x1xf32>
      %121 = vector.shape_cast %120 : vector<1x16x1xf32> to vector<16x1xf32>
      %122 = vector.shape_cast %95 : vector<16x1xf32> to vector<1x16x1xf32>
      tpu.vector_store %arg13[%c1_62, %c0_63, %c0_64], %122 {strides = array<i32>} : memref<4x16x1xf32, #tpu.memory_space<vmem>>, vector<1x16x1xf32>,
      %123 = vector.extract_strided_slice %39 {offsets = [0, 16], sizes = [16, 8], strides = [1, 1]} : vector<16x32xf32> to vector<16x8xf32>
      %124 = vector.extract_strided_slice %36 {offsets = [0, 16], sizes = [16, 8], strides = [1, 1]} : vector<16x32xf32> to vector<16x8xf32>
      %125 = tpu.transpose %124, [1, 0] : vector<16x8xf32> -> vector<8x16xf32>
      %cst_65 = arith.constant dense<0.000000e+00> : vector<16x16xf32>
      %126 = tpu.matmul %123, %125, %cst_65 {dimension_numbers = #tpu.dot_dimension_numbers<[1], [0], [0], [1], [0, 0, 1, 1], [], []>} : vector<16x8xf32>, vector<8x16xf32>, vector<16x16xf32> -> vector<16x16xf32>
      %cst_66 = arith.constant -1.000000e+30 : f32
      %127 = vector.broadcast %cst_66 : f32 to vector<16x16xf32>
      %128 = arith.select %46, %126, %127 : vector<16x16xi1>, vector<16x16xf32>
      %c2 = arith.constant 2 : index
      %c0_67 = arith.constant 0 : index
      %c0_68 = arith.constant 0 : index
      %129 = vector.load %arg13[%c2, %c0_67, %c0_68] : memref<4x16x1xf32, #tpu.memory_space<vmem>>, vector<1x16x1xf32>
      %130 = vector.shape_cast %129 : vector<1x16x1xf32> to vector<16x1xf32>
      %cst_69 = arith.constant dense<0xFF800000> : vector<16xf32>
      %131 = vector.multi_reduction <maximumf>, %128, %cst_69 [1] : vector<16x16xf32> to vector<16xf32>
      %132 = vector.shape_cast %131 : vector<16xf32> to vector<16x1xf32>
      %133 = arith.maximumf %130, %132 : vector<16x1xf32>
      %134 = arith.subf %130, %133 : vector<16x1xf32>
      %135 = math.exp %134 : vector<16x1xf32>
      %136 = vector.broadcast %133 : vector<16x1xf32> to vector<16x16xf32>
      %137 = arith.subf %128, %136 : vector<16x16xf32>
      %138 = math.exp %137 : vector<16x16xf32>
      %c2_70 = arith.constant 2 : index
      %c0_71 = arith.constant 0 : index
      %c0_72 = arith.constant 0 : index
      %139 = vector.load %arg14[%c2_70, %c0_71, %c0_72] : memref<4x16x1xf32, #tpu.memory_space<vmem>>, vector<1x16x1xf32>
      %140 = vector.shape_cast %139 : vector<1x16x1xf32> to vector<16x1xf32>
      %141 = arith.mulf %135, %140 : vector<16x1xf32>
      %cst_73 = arith.constant dense<0.000000e+00> : vector<16xf32>
      %142 = vector.multi_reduction <add>, %138, %cst_73 [1] : vector<16x16xf32> to vector<16xf32>
      %143 = vector.shape_cast %142 : vector<16xf32> to vector<16x1xf32>
      %144 = arith.addf %141, %143 : vector<16x1xf32>
      %c2_74 = arith.constant 2 : index
      %c0_75 = arith.constant 0 : index
      %c0_76 = arith.constant 0 : index
      %145 = vector.load %arg14[%c2_74, %c0_75, %c0_76] : memref<4x16x1xf32, #tpu.memory_space<vmem>>, vector<1x16x1xf32>
      %146 = vector.shape_cast %145 : vector<1x16x1xf32> to vector<16x1xf32>
      %147 = vector.shape_cast %144 : vector<16x1xf32> to vector<1x16x1xf32>
      tpu.vector_store %arg14[%c2_74, %c0_75, %c0_76], %147 {strides = array<i32>} : memref<4x16x1xf32, #tpu.memory_space<vmem>>, vector<1x16x1xf32>,
      %c2_77 = arith.constant 2 : index
      %c0_78 = arith.constant 0 : index
      %c0_79 = arith.constant 0 : index
      %148 = vector.load %arg12[%c2_77, %c0_78, %c0_79] : memref<4x16x8xf32, #tpu.memory_space<vmem>>, vector<1x16x8xf32>
      %149 = vector.shape_cast %148 : vector<1x16x8xf32> to vector<16x8xf32>
      %150 = vector.broadcast %135 : vector<16x1xf32> to vector<16x8xf32>
      %151 = arith.mulf %150, %149 : vector<16x8xf32>
      %152 = vector.extract_strided_slice %38 {offsets = [0, 16], sizes = [16, 8], strides = [1, 1]} : vector<16x32xf32> to vector<16x8xf32>
      %cst_80 = arith.constant dense<0.000000e+00> : vector<16x8xf32>
      %153 = tpu.matmul %138, %152, %cst_80 {dimension_numbers = #tpu.dot_dimension_numbers<[1], [0], [0], [1], [0, 0, 1, 1], [], []>} : vector<16x16xf32>, vector<16x8xf32>, vector<16x8xf32> -> vector<16x8xf32>
      %154 = arith.addf %151, %153 : vector<16x8xf32>
      %c2_81 = arith.constant 2 : index
      %c0_82 = arith.constant 0 : index
      %c0_83 = arith.constant 0 : index
      %155 = vector.load %arg12[%c2_81, %c0_82, %c0_83] : memref<4x16x8xf32, #tpu.memory_space<vmem>>, vector<1x16x8xf32>
      %156 = vector.shape_cast %155 : vector<1x16x8xf32> to vector<16x8xf32>
      %157 = vector.shape_cast %154 : vector<16x8xf32> to vector<1x16x8xf32>
      tpu.vector_store %arg12[%c2_81, %c0_82, %c0_83], %157 {strides = array<i32>} : memref<4x16x8xf32, #tpu.memory_space<vmem>>, vector<1x16x8xf32>,
      %c2_84 = arith.constant 2 : index
      %c0_85 = arith.constant 0 : index
      %c0_86 = arith.constant 0 : index
      %158 = vector.load %arg13[%c2_84, %c0_85, %c0_86] : memref<4x16x1xf32, #tpu.memory_space<vmem>>, vector<1x16x1xf32>
      %159 = vector.shape_cast %158 : vector<1x16x1xf32> to vector<16x1xf32>
      %160 = vector.shape_cast %133 : vector<16x1xf32> to vector<1x16x1xf32>
      tpu.vector_store %arg13[%c2_84, %c0_85, %c0_86], %160 {strides = array<i32>} : memref<4x16x1xf32, #tpu.memory_space<vmem>>, vector<1x16x1xf32>,
      %161 = vector.extract_strided_slice %39 {offsets = [0, 24], sizes = [16, 8], strides = [1, 1]} : vector<16x32xf32> to vector<16x8xf32>
      %162 = vector.extract_strided_slice %36 {offsets = [0, 24], sizes = [16, 8], strides = [1, 1]} : vector<16x32xf32> to vector<16x8xf32>
      %163 = tpu.transpose %162, [1, 0] : vector<16x8xf32> -> vector<8x16xf32>
      %cst_87 = arith.constant dense<0.000000e+00> : vector<16x16xf32>
      %164 = tpu.matmul %161, %163, %cst_87 {dimension_numbers = #tpu.dot_dimension_numbers<[1], [0], [0], [1], [0, 0, 1, 1], [], []>} : vector<16x8xf32>, vector<8x16xf32>, vector<16x16xf32> -> vector<16x16xf32>
      %cst_88 = arith.constant -1.000000e+30 : f32
      %165 = vector.broadcast %cst_88 : f32 to vector<16x16xf32>
      %166 = arith.select %46, %164, %165 : vector<16x16xi1>, vector<16x16xf32>
      %c3 = arith.constant 3 : index
      %c0_89 = arith.constant 0 : index
      %c0_90 = arith.constant 0 : index
      %167 = vector.load %arg13[%c3, %c0_89, %c0_90] : memref<4x16x1xf32, #tpu.memory_space<vmem>>, vector<1x16x1xf32>
      %168 = vector.shape_cast %167 : vector<1x16x1xf32> to vector<16x1xf32>
      %cst_91 = arith.constant dense<0xFF800000> : vector<16xf32>
      %169 = vector.multi_reduction <maximumf>, %166, %cst_91 [1] : vector<16x16xf32> to vector<16xf32>
      %170 = vector.shape_cast %169 : vector<16xf32> to vector<16x1xf32>
      %171 = arith.maximumf %168, %170 : vector<16x1xf32>
      %172 = arith.subf %168, %171 : vector<16x1xf32>
      %173 = math.exp %172 : vector<16x1xf32>
      %174 = vector.broadcast %171 : vector<16x1xf32> to vector<16x16xf32>
      %175 = arith.subf %166, %174 : vector<16x16xf32>
      %176 = math.exp %175 : vector<16x16xf32>
      %c3_92 = arith.constant 3 : index
      %c0_93 = arith.constant 0 : index
      %c0_94 = arith.constant 0 : index
      %177 = vector.load %arg14[%c3_92, %c0_93, %c0_94] : memref<4x16x1xf32, #tpu.memory_space<vmem>>, vector<1x16x1xf32>
      %178 = vector.shape_cast %177 : vector<1x16x1xf32> to vector<16x1xf32>
      %179 = arith.mulf %173, %178 : vector<16x1xf32>
      %cst_95 = arith.constant dense<0.000000e+00> : vector<16xf32>
      %180 = vector.multi_reduction <add>, %176, %cst_95 [1] : vector<16x16xf32> to vector<16xf32>
      %181 = vector.shape_cast %180 : vector<16xf32> to vector<16x1xf32>
      %182 = arith.addf %179, %181 : vector<16x1xf32>
      %c3_96 = arith.constant 3 : index
      %c0_97 = arith.constant 0 : index
      %c0_98 = arith.constant 0 : index
      %183 = vector.load %arg14[%c3_96, %c0_97, %c0_98] : memref<4x16x1xf32, #tpu.memory_space<vmem>>, vector<1x16x1xf32>
      %184 = vector.shape_cast %183 : vector<1x16x1xf32> to vector<16x1xf32>
      %185 = vector.shape_cast %182 : vector<16x1xf32> to vector<1x16x1xf32>
      tpu.vector_store %arg14[%c3_96, %c0_97, %c0_98], %185 {strides = array<i32>} : memref<4x16x1xf32, #tpu.memory_space<vmem>>, vector<1x16x1xf32>,
      %c3_99 = arith.constant 3 : index
      %c0_100 = arith.constant 0 : index
      %c0_101 = arith.constant 0 : index
      %186 = vector.load %arg12[%c3_99, %c0_100, %c0_101] : memref<4x16x8xf32, #tpu.memory_space<vmem>>, vector<1x16x8xf32>
      %187 = vector.shape_cast %186 : vector<1x16x8xf32> to vector<16x8xf32>
      %188 = vector.broadcast %173 : vector<16x1xf32> to vector<16x8xf32>
      %189 = arith.mulf %188, %187 : vector<16x8xf32>
      %190 = vector.extract_strided_slice %38 {offsets = [0, 24], sizes = [16, 8], strides = [1, 1]} : vector<16x32xf32> to vector<16x8xf32>
      %cst_102 = arith.constant dense<0.000000e+00> : vector<16x8xf32>
      %191 = tpu.matmul %176, %190, %cst_102 {dimension_numbers = #tpu.dot_dimension_numbers<[1], [0], [0], [1], [0, 0, 1, 1], [], []>} : vector<16x16xf32>, vector<16x8xf32>, vector<16x8xf32> -> vector<16x8xf32>
      %192 = arith.addf %189, %191 : vector<16x8xf32>
      %c3_103 = arith.constant 3 : index
      %c0_104 = arith.constant 0 : index
      %c0_105 = arith.constant 0 : index
      %193 = vector.load %arg12[%c3_103, %c0_104, %c0_105] : memref<4x16x8xf32, #tpu.memory_space<vmem>>, vector<1x16x8xf32>
      %194 = vector.shape_cast %193 : vector<1x16x8xf32> to vector<16x8xf32>
      %195 = vector.shape_cast %192 : vector<16x8xf32> to vector<1x16x8xf32>
      tpu.vector_store %arg12[%c3_103, %c0_104, %c0_105], %195 {strides = array<i32>} : memref<4x16x8xf32, #tpu.memory_space<vmem>>, vector<1x16x8xf32>,
      %c3_106 = arith.constant 3 : index
      %c0_107 = arith.constant 0 : index
      %c0_108 = arith.constant 0 : index
      %196 = vector.load %arg13[%c3_106, %c0_107, %c0_108] : memref<4x16x1xf32, #tpu.memory_space<vmem>>, vector<1x16x1xf32>
      %197 = vector.shape_cast %196 : vector<1x16x1xf32> to vector<16x1xf32>
      %198 = vector.shape_cast %171 : vector<16x1xf32> to vector<1x16x1xf32>
      tpu.vector_store %arg13[%c3_106, %c0_107, %c0_108], %198 {strides = array<i32>} : memref<4x16x1xf32, #tpu.memory_space<vmem>>, vector<1x16x1xf32>,
    } else {
    }
    %c0_i32_4 = arith.constant 0 : i32
    %10 = arith.cmpi eq, %arg2, %c0_i32_4 : i32
    %11 = arith.extui %10 : i1 to i32
    %c0_i32_5 = arith.constant 0 : i32
    %12 = arith.cmpi ne, %11, %c0_i32_5 : i32
    scf.if %12 {
      %c0 = arith.constant 0 : index
      %c0_6 = arith.constant 0 : index
      %c0_7 = arith.constant 0 : index
      %13 = vector.load %arg14[%c0, %c0_6, %c0_7] : memref<4x16x1xf32, #tpu.memory_space<vmem>>, vector<4x16x1xf32>
      %14 = tpu.reciprocal %13 {approx = true} : vector<4x16x1xf32> -> vector<4x16x1xf32>
      %c0_8 = arith.constant 0 : index
      %c0_9 = arith.constant 0 : index
      %c0_10 = arith.constant 0 : index
      %15 = vector.load %arg12[%c0_8, %c0_9, %c0_10] : memref<4x16x8xf32, #tpu.memory_space<vmem>>, vector<1x16x8xf32>
      %16 = vector.shape_cast %15 : vector<1x16x8xf32> to vector<16x8xf32>
      %17 = vector.extract_strided_slice %14 {offsets = [0, 0, 0], sizes = [1, 16, 1], strides = [1, 1, 1]} : vector<4x16x1xf32> to vector<1x16x1xf32>
      %18 = vector.shape_cast %17 : vector<1x16x1xf32> to vector<16x1xf32>
      %19 = vector.broadcast %18 : vector<16x1xf32> to vector<16x8xf32>
      %20 = arith.mulf %16, %19 : vector<16x8xf32>
      %c1 = arith.constant 1 : index
      %c0_11 = arith.constant 0 : index
      %c0_12 = arith.constant 0 : index
      %21 = vector.load %arg12[%c1, %c0_11, %c0_12] : memref<4x16x8xf32, #tpu.memory_space<vmem>>, vector<1x16x8xf32>
      %22 = vector.shape_cast %21 : vector<1x16x8xf32> to vector<16x8xf32>
      %23 = vector.extract_strided_slice %14 {offsets = [1, 0, 0], sizes = [1, 16, 1], strides = [1, 1, 1]} : vector<4x16x1xf32> to vector<1x16x1xf32>
      %24 = vector.shape_cast %23 : vector<1x16x1xf32> to vector<16x1xf32>
      %25 = vector.broadcast %24 : vector<16x1xf32> to vector<16x8xf32>
      %26 = arith.mulf %22, %25 : vector<16x8xf32>
      %c2 = arith.constant 2 : index
      %c0_13 = arith.constant 0 : index
      %c0_14 = arith.constant 0 : index
      %27 = vector.load %arg12[%c2, %c0_13, %c0_14] : memref<4x16x8xf32, #tpu.memory_space<vmem>>, vector<1x16x8xf32>
      %28 = vector.shape_cast %27 : vector<1x16x8xf32> to vector<16x8xf32>
      %29 = vector.extract_strided_slice %14 {offsets = [2, 0, 0], sizes = [1, 16, 1], strides = [1, 1, 1]} : vector<4x16x1xf32> to vector<1x16x1xf32>
      %30 = vector.shape_cast %29 : vector<1x16x1xf32> to vector<16x1xf32>
      %31 = vector.broadcast %30 : vector<16x1xf32> to vector<16x8xf32>
      %32 = arith.mulf %28, %31 : vector<16x8xf32>
      %c3 = arith.constant 3 : index
      %c0_15 = arith.constant 0 : index
      %c0_16 = arith.constant 0 : index
      %33 = vector.load %arg12[%c3, %c0_15, %c0_16] : memref<4x16x8xf32, #tpu.memory_space<vmem>>, vector<1x16x8xf32>
      %34 = vector.shape_cast %33 : vector<1x16x8xf32> to vector<16x8xf32>
      %35 = vector.extract_strided_slice %14 {offsets = [3, 0, 0], sizes = [1, 16, 1], strides = [1, 1, 1]} : vector<4x16x1xf32> to vector<1x16x1xf32>
      %36 = vector.shape_cast %35 : vector<1x16x1xf32> to vector<16x1xf32>
      %37 = vector.broadcast %36 : vector<16x1xf32> to vector<16x8xf32>
      %38 = arith.mulf %34, %37 : vector<16x8xf32>
      %39 = tpu.concatenate %20, %26, %32, %38 in 1 : vector<16x8xf32>, vector<16x8xf32>, vector<16x8xf32>, vector<16x8xf32> -> vector<16x32xf32>
      %c0_17 = arith.constant 0 : index
      %c0_18 = arith.constant 0 : index
      %c0_19 = arith.constant 0 : index
      %40 = vector.load %arg10[%c0_17, %c0_18, %c0_19] : memref<1x16x32xf32, #tpu.memory_space<vmem>>, vector<1x16x32xf32>
      %41 = vector.shape_cast %40 : vector<1x16x32xf32> to vector<16x32xf32>
      %42 = vector.shape_cast %39 : vector<16x32xf32> to vector<1x16x32xf32>
      tpu.vector_store %arg10[%c0_17, %c0_18, %c0_19], %42 {strides = array<i32>} : memref<1x16x32xf32, #tpu.memory_space<vmem>>, vector<1x16x32xf32>,
    } else {
    }
    return
  }
  func.func @transform_0(%arg0: i32, %arg1: i32, %arg2: i32) -> (i32, i32, i32) {
    %c0_i32 = arith.constant 0 : i32
    %c0_i32_0 = arith.constant 0 : i32
    return %arg0, %arg1, %c0_i32 : i32, i32, i32
  }
  func.func @transform_1(%arg0: i32, %arg1: i32, %arg2: i32) -> (i32, i32, i32) {
    %c0_i32 = arith.constant 0 : i32
    %c0_i32_0 = arith.constant 0 : i32
    return %arg0, %arg2, %c0_i32 : i32, i32, i32
  }
  func.func @transform_2(%arg0: i32, %arg1: i32, %arg2: i32) -> (i32, i32, i32) {
    %c0_i32 = arith.constant 0 : i32
    %c0_i32_0 = arith.constant 0 : i32
    return %arg0, %arg2, %c0_i32 : i32, i32, i32
  }
  func.func @transform_3(%arg0: i32, %arg1: i32, %arg2: i32) -> (i32, i32) {
    %c0_i32 = arith.constant 0 : i32
    %c0_i32_0 = arith.constant 0 : i32
    return %arg1, %c0_i32 : i32, i32
  }
  func.func @transform_4(%arg0: i32, %arg1: i32, %arg2: i32) -> (i32, i32) {
    %c0_i32 = arith.constant 0 : i32
    %c0_i32_0 = arith.constant 0 : i32
    return %arg1, %c0_i32 : i32, i32
  }
  func.func @transform_5(%arg0: i32, %arg1: i32, %arg2: i32) -> (i32, i32) {
    %c0_i32 = arith.constant 0 : i32
    %c0_i32_0 = arith.constant 0 : i32
    return %arg2, %c0_i32 : i32, i32
  }
  func.func @transform_6(%arg0: i32, %arg1: i32, %arg2: i32) -> (i32, i32) {
    %c0_i32 = arith.constant 0 : i32
    %c0_i32_0 = arith.constant 0 : i32
    return %arg2, %c0_i32 : i32, i32
  }
  func.func @transform_7(%arg0: i32, %arg1: i32, %arg2: i32) -> (i32, i32, i32) {
    %c0_i32 = arith.constant 0 : i32
    %c0_i32_0 = arith.constant 0 : i32
    return %arg0, %arg1, %c0_i32 : i32, i32, i32
  }
}

</mosaic_0001>

<llo_original>
// kernel: rotary_causal_self_attention.7
$region0: #{rotary_causal_self_attention.7}
  #allocation0 [shape = 'u32[]', space=smem, size = 0x4, offset = 0x4, fixed_abs, tag = 'smem constant byte address 0x4 - core index']
  #allocation1 [shape = 'u32[144,128]{1,0:T(1,128)}', space=vmem, size = 0x12000, scoped, tag = 'internal scratch']
  #allocation2 [shape = 'f32[32,32]{1,0:T(8,128)}', space=vmem, size = 0x4000, scoped, tag = 'scratch operand']
  %s0 = inlined_call_operand.hbm [shape: f32[32,32], index: 0, kind: input, shape index: {}]
  %s1 = inlined_call_operand.hbm [shape: f32[32,32], index: 1, kind: input, shape index: {}]
  %s2 = inlined_call_operand.hbm [shape: f32[32,32], index: 2, kind: output, shape index: {}]
  %s3 = sld [smem:[#allocation0]]
  $region34: #{rotary_causal_self_attention.7} parent=0
    _
  %s5 = ssub.s32 1, %s3
  %s6 = scalar_select 0, %s5, %s3
  $region1: #{rotary_causal_self_attention.7} parent=0
    #allocation3 [shape = 'u8[16384]{0}', space=vmem, size = 0x4000, scoped, tag = 'input window, operand 0, single buffered']
    #allocation4 [shape = 's32[1]{0}', space=sflag, size = 0x4, scoped, tag = 'scoped memory for rotary_causal_self_attention.7']
    #allocation5 [shape = 's32[1]{0}', space=sflag, size = 0x4, scoped, tag = 'scoped memory for rotary_causal_self_attention.7']
    #allocation6 [shape = 'u8[16384]{0}', space=vmem, size = 0x4000, scoped, tag = 'input window, operand 1, single buffered']
    #allocation7 [shape = 's32[1]{0}', space=sflag, size = 0x4, scoped, tag = 'scoped memory for rotary_causal_self_attention.7']
    #allocation8 [shape = 'u8[16384]{0}', space=vmem, size = 0x4000, scoped, tag = 'output window, operand 0, single buffered']
    %7 = vsyncpa [#allocation4], 0
    %8 = vsyncpa [#allocation7], 0
    %9 = vsyncpa [#allocation5], 0
    // Predicated region
    $region2: #{rotary_causal_self_attention.7} parent=1 // pred_check
      _
    $region3: #{rotary_causal_self_attention.7} parent=1 // pred_check_branch
      %11 = sbr.rel (0) target = $region5
    $region4: #{rotary_causal_self_attention.7} parent=1 // pred_region
      %s13 = ssub.s32 512, 512
      %14 = vsyncadd [#allocation4], %s13
      %s15 = sshll.u32 [#allocation3], 4
      %s16 = int_to_ptr.vmem [resolvable:$true] %s15
      %21 = dma.hbm_to_vmem [thread:$0]  %s0, 512, %s16, [#allocation4], 128, 128, 8
    $region5: #{rotary_causal_self_attention.7} parent=1 // pred_fallthru
      _
    // Predicated region
    $region6: #{rotary_causal_self_attention.7} parent=1 // pred_check
      _
    $region7: #{rotary_causal_self_attention.7} parent=1 // pred_check_branch
      %23 = sbr.rel (0) target = $region9
    $region8: #{rotary_causal_self_attention.7} parent=1 // pred_region
      %s25 = ssub.s32 512, 512
      %26 = vsyncadd [#allocation7], %s25
      %s27 = sshll.u32 [#allocation6], 4
      %s28 = int_to_ptr.vmem [resolvable:$true] %s27
      %33 = dma.hbm_to_vmem [thread:$0]  %s1, 512, %s28, [#allocation7], 128, 128, 8
    $region9: #{rotary_causal_self_attention.7} parent=1 // pred_fallthru
      _
    // Predicated region
    $region10: #{rotary_causal_self_attention.7} parent=1 // pred_check
      _
    $region11: #{rotary_causal_self_attention.7} parent=1 // pred_check_branch
      %35 = sbr.rel (0) target = $region13
    $region12: #{rotary_causal_self_attention.7} parent=1 // pred_region
      %36 = dma.done [#allocation4], 512
    $region13: #{rotary_causal_self_attention.7} parent=1 // pred_fallthru
      _
    // Predicated region
    $region14: #{rotary_causal_self_attention.7} parent=1 // pred_check
      _
    $region15: #{rotary_causal_self_attention.7} parent=1 // pred_check_branch
      %38 = sbr.rel (0) target = $region17
    $region16: #{rotary_causal_self_attention.7} parent=1 // pred_region
      %39 = dma.done [#allocation7], 512
    $region17: #{rotary_causal_self_attention.7} parent=1 // pred_fallthru
      _
    %p40 = scmp.eq.s32.totalorder 0, 0
    // Predicated region
    $region18: #{rotary_causal_self_attention.7} parent=1 // pred_check
      %p41 = pneg %p40
    $region19: #{rotary_causal_self_attention.7} parent=1 // pred_check_branch
      %43 = sbr.rel (%p41) target = $region21
    $region20: #{rotary_causal_self_attention.7} parent=1 // pred_region
      %vm44 = vcmask 261120
      %45 = vst.msk [vmem:[#allocation2] sm:$0xff] %vm44, 0.0
      %46 = vst.msk [vmem:[#allocation2 + $0x8] sm:$0xff] %vm44, 0.0
      %47 = vst.msk [vmem:[#allocation2 + $0x10] sm:$0xff] %vm44, 0.0
      %48 = vst.msk [vmem:[#allocation2 + $0x18] sm:$0xff] %vm44, 0.0
    $region21: #{rotary_causal_self_attention.7} parent=1 // pred_fallthru
      _
    %v49 = vld [vmem:[#allocation2] sm:$0xff]
    %v50 = vld [vmem:[#allocation2 + $0x8] sm:$0xff]
    %v51 = vld [vmem:[#allocation2 + $0x10] sm:$0xff]
    %v52 = vld [vmem:[#allocation2 + $0x18] sm:$0xff]
    %v53 = vld [vmem:[#allocation3] sm:$0xff]
    %v54 = vld [vmem:[#allocation3 + $0x8] sm:$0xff]
    %v55 = vld [vmem:[#allocation3 + $0x10] sm:$0xff]
    %v56 = vld [vmem:[#allocation3 + $0x18] sm:$0xff]
    %v57 = vld [vmem:[#allocation6] sm:$0xff]
    %v58 = vld [vmem:[#allocation6 + $0x8] sm:$0xff]
    %v59 = vld [vmem:[#allocation6 + $0x10] sm:$0xff]
    %v60 = vld [vmem:[#allocation6 + $0x18] sm:$0xff]
    %vm61 = vcmask 261120
    %v63 = vsel %vm61, %v53, 0
    %v66 = vsel %vm61, %v54, 0
    %v69 = vsel %vm61, %v55, 0
    %v72 = vsel %vm61, %v56, 0
    %74 = vmatprep.subr.mxu0 0.0
    %75 = vmatpush1.msra.mxu0 %v57
    %76 = vmatprep.subr.mxu0 0.0
    %77 = vmatpush1.msra.mxu0 %v58
    %78 = vmatprep.subr.mxu0 0.0
    %79 = vmatpush1.msra.mxu0 %v59
    %80 = vmatprep.subr.mxu0 0.0
    %81 = vmatpush1.msra.mxu0 %v60
    %82 = vmatprep.subr.mxu0 0.0
    %83 = vmatpush1.msra.mxu0 0.0
    %84 = vmatprep.subr.mxu0 0.0
    %85 = vmatpush1.msra.mxu0 0.0
    %86 = vmatprep.subr.mxu0 0.0
    %87 = vmatpush1.msra.mxu0 0.0
    %88 = vmatprep.subr.mxu0 0.0
    %89 = vmatpush1.msra.mxu0 0.0
    %90 = vmatprep.subr.mxu0 0.0
    %91 = vmatpush1.msra.mxu0 0.0
    %92 = vmatprep.subr.mxu0 0.0
    %93 = vmatpush1.msra.mxu0 0.0
    %94 = vmatprep.subr.mxu0 0.0
    %95 = vmatpush1.msra.mxu0 0.0
    %96 = vmatprep.subr.mxu0 0.0
    %97 = vmatpush1.msra.mxu0 0.0
    %98 = vmatprep.subr.mxu0 0.0
    %99 = vmatpush1.msra.mxu0 0.0
    %100 = vmatprep.subr.mxu0 0.0
    %101 = vmatpush1.msra.mxu0 0.0
    %102 = vmatprep.subr.mxu0 0.0
    %103 = vmatpush1.msra.mxu0 0.0
    %104 = vmatprep.subr.mxu0 0.0
    %105 = vmatpush1.msra.mxu0 0.0
    %106 = vmatprep.subr.mxu0 0.0
    %107 = vmatpush1.msra.mxu0 0.0
    %108 = vmatprep.subr.mxu0 0.0
    %109 = vmatpush1.msra.mxu0 0.0
    %110 = vmatprep.subr.mxu0 0.0
    %111 = vmatpush1.msra.mxu0 0.0
    %112 = vmatprep.subr.mxu0 0.0
    %113 = vmatpush1.msra.mxu0 0.0
    %114 = vmatprep.subr.mxu0 0.0
    %115 = vmatpush1.msra.mxu0 0.0
    %116 = vmatprep.subr.mxu0 0.0
    %117 = vmatpush1.msra.mxu0 0.0
    %118 = vmatprep.subr.mxu0 0.0
    %119 = vmatpush1.msra.mxu0 0.0
    %120 = vmatprep.subr.mxu0 0.0
    %121 = vmatpush1.msra.mxu0 0.0
    %122 = vmatprep.subr.mxu0 0.0
    %123 = vmatpush1.msra.mxu0 0.0
    %124 = vmatprep.subr.mxu0 0.0
    %125 = vmatpush1.msra.mxu0 0.0
    %126 = vmatprep.subr.mxu0 0.0
    %127 = vmatpush1.msra.mxu0 0.0
    %128 = vmatprep.subr.mxu0 0.0
    %129 = vmatpush1.msra.mxu0 0.0
    %130 = vmatprep.subr.mxu0 0.0
    %131 = vmatpush1.msra.mxu0 0.0
    %132 = vmatprep.subr.mxu0 0.0
    %133 = vmatpush1.msra.mxu0 0.0
    %134 = vmatprep.subr.mxu0 0.0
    %135 = vmatpush1.msra.mxu0 0.0
    %136 = vmatprep.subr.mxu0 0.0
    %137 = vmatpush1.msra.mxu0 0.0
    %138 = vmatprep.mubr.f32.mxu0 0.0
    %139 = vmatmul.mubr.f32.gmra.mrb[0].mxu0 %v63
    %v140 = vpop.f32.mrb[0].mxu0
    %v141 = vadd.f32 0.0, %v140
    %v142 = vpop.f32.mrb[0].mxu0
    %143 = vmatprep.mubr.f32.mxu0 0.0
    %144 = vmatmul.mubr.f32.gmra.mrb[0].mxu0 %v66
    %v145 = vpop.f32.mrb[0].mxu0
    %v146 = vadd.f32 0.0, %v145
    %v147 = vpop.f32.mrb[0].mxu0
    %148 = vmatprep.mubr.f32.mxu0 0.0
    %149 = vmatmul.mubr.f32.gmra.mrb[0].mxu0 %v69
    %v150 = vpop.f32.mrb[0].mxu0
    %v151 = vadd.f32 0.0, %v150
    %v152 = vpop.f32.mrb[0].mxu0
    %153 = vmatprep.mubr.f32.mxu0 0.0
    %154 = vmatmul.mubr.f32.gmra.mrb[0].mxu0 %v72
    %v155 = vpop.f32.mrb[0].mxu0
    %v156 = vadd.f32 0.0, %v155
    %v157 = vpop.f32.mrb[0].mxu0
    %158 = vdwg.mxu0
    %v159 = vadd.f32 %v49, %v141
    %v160 = vadd.f32 %v50, %v146
    %v161 = vadd.f32 %v51, %v151
    %v162 = vadd.f32 %v52, %v156
    %163 = vst.msk [vmem:[#allocation2] sm:$0xff] %vm61, %v159
    %164 = vst.msk [vmem:[#allocation2 + $0x8] sm:$0xff] %vm61, %v160
    %165 = vst.msk [vmem:[#allocation2 + $0x10] sm:$0xff] %vm61, %v161
    %166 = vst.msk [vmem:[#allocation2 + $0x18] sm:$0xff] %vm61, %v162
    // Predicated region
    $region22: #{rotary_causal_self_attention.7} parent=1 // pred_check
      %p167 = pneg %p40
    $region23: #{rotary_causal_self_attention.7} parent=1 // pred_check_branch
      %169 = sbr.rel (%p167) target = $region25
    $region24: #{rotary_causal_self_attention.7} parent=1 // pred_region
      %v170 = vld [vmem:[#allocation2] sm:$0xff]
      %v171 = vld [vmem:[#allocation2 + $0x8] sm:$0xff]
      %v172 = vld [vmem:[#allocation2 + $0x10] sm:$0xff]
      %v173 = vld [vmem:[#allocation2 + $0x18] sm:$0xff]
      %174 = vst.msk [vmem:[#allocation8] sm:$0xff] %vm61, %v170
      %175 = vst.msk [vmem:[#allocation8 + $0x8] sm:$0xff] %vm61, %v171
      %176 = vst.msk [vmem:[#allocation8 + $0x10] sm:$0xff] %vm61, %v172
      %177 = vst.msk [vmem:[#allocation8 + $0x18] sm:$0xff] %vm61, %v173
    $region25: #{rotary_causal_self_attention.7} parent=1 // pred_fallthru
      _
    // Predicated region
    $region26: #{rotary_causal_self_attention.7} parent=1 // pred_check
      _
    $region27: #{rotary_causal_self_attention.7} parent=1 // pred_check_branch
      %179 = sbr.rel (0) target = $region29
    $region28: #{rotary_causal_self_attention.7} parent=1 // pred_region
      %s181 = ssub.s32 512, 512
      %182 = vsyncadd [#allocation5], %s181
      %s183 = sshll.u32 [#allocation8], 4
      %s184 = int_to_ptr.vmem [resolvable:$true] %s183
      %189 = dma.vmem_to_hbm [thread:$0]  %s184, 512, %s2, [#allocation5], 128, 128, 8
    $region29: #{rotary_causal_self_attention.7} parent=1 // pred_fallthru
      _
    // Predicated region
    $region30: #{rotary_causal_self_attention.7} parent=1 // pred_check
      _
    $region31: #{rotary_causal_self_attention.7} parent=1 // pred_check_branch
      %191 = sbr.rel (0) target = $region33
    $region32: #{rotary_causal_self_attention.7} parent=1 // pred_region
      %192 = dma.done [#allocation5], 512
    $region33: #{rotary_causal_self_attention.7} parent=1 // pred_fallthru
      _
    %193 = vsyncpa [#allocation4], 1
    %194 = vsyncpa [#allocation7], 1
    %195 = vsyncpa [#allocation5], 1

// kernel: rotary_causal_self_attention.8
$region0: #{rotary_causal_self_attention.8}
  #allocation0 [shape = 'u32[]', space=smem, size = 0x4, offset = 0x4, fixed_abs, tag = 'smem constant byte address 0x4 - core index']
  #allocation1 [shape = 'u32[144,128]{1,0:T(1,128)}', space=vmem, size = 0x12000, scoped, tag = 'internal scratch']
  #allocation2 [shape = 'f32[16,32]{1,0:T(8,128)}', space=vmem, size = 0x2000, scoped, tag = 'scratch operand']
  #allocation3 [shape = 'f32[4,16,8]{2,1,0:T(8,128)}', space=vmem, size = 0x8000, scoped, tag = 'scratch operand']
  #allocation4 [shape = 'f32[4,16,1]{2,1,0:T(8,128)}', space=vmem, size = 0x8000, scoped, tag = 'scratch operand']
  #allocation5 [shape = 'f32[4,16,1]{2,1,0:T(8,128)}', space=vmem, size = 0x8000, scoped, tag = 'scratch operand']
  %s0 = inlined_call_operand.hbm [shape: f32[2,16,32], index: 0, kind: input, shape index: {}]
  %s1 = inlined_call_operand.hbm [shape: f32[2,16,32], index: 1, kind: input, shape index: {}]
  %s2 = inlined_call_operand.hbm [shape: f32[2,16,32], index: 2, kind: input, shape index: {}]
  %s3 = inlined_call_operand.hbm [shape: f32[16,32], index: 3, kind: input, shape index: {}, may-alias: {3,5}]
  %s4 = inlined_call_operand.hbm [shape: f32[16,32], index: 4, kind: input, shape index: {}, may-alias: {4,6}]
  %s5 = inlined_call_operand.hbm [shape: f32[16,32], index: 5, kind: input, shape index: {}, may-alias: {3,5}]
  %s6 = inlined_call_operand.hbm [shape: f32[16,32], index: 6, kind: input, shape index: {}, may-alias: {4,6}]
  %s7 = inlined_call_operand.hbm [shape: f32[2,16,32], index: 7, kind: output, shape index: {}]
  %s8 = sld [smem:[#allocation0]]
  $region101: #{rotary_causal_self_attention.8} parent=0
    _
  %s10 = ssub.s32 1, %s8
  %s11 = scalar_select 0, %s10, %s8
  $region1: #{rotary_causal_self_attention.8} parent=0
    #allocation6 [shape = 'u8[16384]{0}', space=vmem, size = 0x4000, scoped, tag = 'input window, operand 0']
    #allocation7 [shape = 's32[2]{0}', space=sflag, size = 0x8, scoped, tag = 'scoped memory for rotary_causal_self_attention.8']
    #allocation8 [shape = 's32[2]{0}', space=sflag, size = 0x8, scoped, tag = 'scoped memory for rotary_causal_self_attention.8']
    #allocation9 [shape = 'u8[16384]{0}', space=vmem, size = 0x4000, scoped, tag = 'input window, operand 1']
    #allocation10 [shape = 's32[2]{0}', space=sflag, size = 0x8, scoped, tag = 'scoped memory for rotary_causal_self_attention.8']
    #allocation11 [shape = 'u8[16384]{0}', space=vmem, size = 0x4000, scoped, tag = 'input window, operand 2']
    #allocation12 [shape = 'u8[8192]{0}', space=vmem, size = 0x2000, scoped, tag = 'input window, operand 3, single buffered']
    #allocation13 [shape = 's32[1]{0}', space=sflag, size = 0x4, scoped, tag = 'scoped memory for rotary_causal_self_attention.8']
    #allocation14 [shape = 'u8[8192]{0}', space=vmem, size = 0x2000, scoped, tag = 'input window, operand 4, single buffered']
    #allocation15 [shape = 'u8[8192]{0}', space=vmem, size = 0x2000, scoped, tag = 'input window, operand 5, single buffered']
    #allocation16 [shape = 's32[1]{0}', space=sflag, size = 0x4, scoped, tag = 'scoped memory for rotary_causal_self_attention.8']
    #allocation17 [shape = 'u8[8192]{0}', space=vmem, size = 0x2000, scoped, tag = 'input window, operand 6, single buffered']
    #allocation18 [shape = 'u8[16384]{0}', space=vmem, size = 0x4000, scoped, tag = 'output window, operand 0']
    %12 = vsyncpa [#allocation7], 0
    %s13 = scalar_lea.sflag [#allocation7], 1
    %14 = vsyncpa %s13, 0
    %15 = vsyncpa [#allocation10], 0
    %s16 = scalar_lea.sflag [#allocation10], 1
    %17 = vsyncpa %s16, 0
    %18 = vsyncpa [#allocation13], 0
    %19 = vsyncpa [#allocation16], 0
    %20 = vsyncpa [#allocation8], 0
    %s21 = scalar_lea.sflag [#allocation8], 1
    %22 = vsyncpa %s21, 0
    loop: start=0, step=1, limit=4
    $region2: #{rotary_causal_self_attention.8} parent=1 // loop_pre_header
      _
    $region3: #{rotary_causal_self_attention.8} parent=1 // loop_header
      %s24 = sphi 0, %s28
      %p25 = scmp.ge.s32.totalorder %s24, 4
      %s31 = sphi 0, %s50
      %s32 = sphi 0, %s46
      %s33 = sphi 0, %s42
      %s34 = sphi 0, %s31
      %s35 = sphi 0, %s32
      %s36 = sphi 0, %s33
      %s37 = sphi 0, %s34
      %s38 = sphi 0, %s35
      %s39 = sphi 0, %s36
      %s55 = sphi 0, %s57
      %s58 = sphi 0, %s55
      %s59 = sphi 0, %s58
      %s75 = sphi 0, %s59
      %s83 = sphi 0, %s85
      %s86 = sphi 0, %s83
      %s87 = sphi 0, %s86
      %s103 = sphi 0, %s87
      %s111 = sphi 0, %s113
      %s114 = sphi 0, %s111
      %s115 = sphi 0, %s114
      %s131 = sphi 0, %s115
      %s137 = sphi 0, %s139
      %s140 = sphi 0, %s137
      %s141 = sphi 0, %s140
      %s157 = sphi 0, %s141
      %s163 = sphi 0, %s165
      %s166 = sphi 0, %s163
      %s167 = sphi 0, %s166
      %s183 = sphi 0, %s167
      %s189 = sphi 0, %s191
      %s192 = sphi 0, %s189
      %s193 = sphi 0, %s192
      %s209 = sphi 0, %s193
      %s215 = sphi 0, %s217
      %s218 = sphi 0, %s215
      %s219 = sphi 0, %s218
      %s235 = sphi 0, %s219
      %s243 = sphi 0, %s245
      %s246 = sphi 0, %s243
      %s247 = sphi 0, %s246
      %s263 = sphi 0, %s247
    $region4: #{rotary_causal_self_attention.8} parent=1 // loop_header_branch
      %27 = sbr.rel (%p25) target = $region8
    $region5: #{rotary_causal_self_attention.8} parent=1 // loop_body
      %s29 = ssub.s32 %s24, 1
      %s30 = ssub.s32 %s24, 2
      %s40 = sadd.s32 1, %s33
      %p41 = scmp.ge.s32.totalorder %s40, 1
      %s42 = scalar_select %p41, 0, %s40
      %s43 = sadd.s32 1, %s32
      %s44 = scalar_select %p41, %s43, %s32
      %p45 = scmp.ge.s32.totalorder %s44, 1
      %s46 = scalar_select %p45, 0, %s44
      %s47 = sadd.s32 1, %s31
      %s48 = scalar_select %p45, %s47, %s31
      %p49 = scmp.ge.s32.totalorder %s48, 2
      %s50 = scalar_select %p49, 0, %s48
      %s51 = ssub.s32 %s31, %s50
      %s52 = ssub.s32 %s32, %s46
      %s53 = sor.u32 %s51, %s52
      %p54 = scmp.eq.s32.totalorder %s53, 0
      %s56 = sadd.s32 %s55, 1
      %s57 = scalar_select %p54, %s55, %s56
      %p60 = pneg %p54
      %p61 = scmp.eq.s32.totalorder %s24, 1
      %p62 = por %p60, %p61
      %p63 = scmp.ne.s32.totalorder %s55, %s58
      %p64 = scmp.eq.s32.totalorder %s24, 0
      %p65 = por %p63, %p64
      %p66 = scmp.ne.s32.totalorder %s55, %s58
      %p67 = scmp.eq.s32.totalorder %s29, 1
      %p68 = por %p66, %p67
      %p69 = scmp.ne.s32.totalorder %s58, %s59
      %p70 = scmp.eq.s32.totalorder %s29, 0
      %p71 = por %p69, %p70
      %p72 = scmp.ne.s32.totalorder %s58, %s59
      %p73 = scmp.eq.s32.totalorder %s30, 1
      %p74 = por %p72, %p73
      %p76 = scmp.ne.s32.totalorder %s59, %s75
      %p77 = scmp.eq.s32.totalorder %s30, 0
      %p78 = por %p76, %p77
      %s79 = ssub.s32 %s31, %s50
      %s80 = ssub.s32 %s33, %s42
      %s81 = sor.u32 %s79, %s80
      %p82 = scmp.eq.s32.totalorder %s81, 0
      %s84 = sadd.s32 %s83, 1
      %s85 = scalar_select %p82, %s83, %s84
      %p88 = pneg %p82
      %p89 = scmp.eq.s32.totalorder %s24, 1
      %p90 = por %p88, %p89
      %p91 = scmp.ne.s32.totalorder %s83, %s86
      %p92 = scmp.eq.s32.totalorder %s24, 0
      %p93 = por %p91, %p92
      %p94 = scmp.ne.s32.totalorder %s83, %s86
      %p95 = scmp.eq.s32.totalorder %s29, 1
      %p96 = por %p94, %p95
      %p97 = scmp.ne.s32.totalorder %s86, %s87
      %p98 = scmp.eq.s32.totalorder %s29, 0
      %p99 = por %p97, %p98
      %p100 = scmp.ne.s32.totalorder %s86, %s87
      %p101 = scmp.eq.s32.totalorder %s30, 1
      %p102 = por %p100, %p101
      %p104 = scmp.ne.s32.totalorder %s87, %s103
      %p105 = scmp.eq.s32.totalorder %s30, 0
      %p106 = por %p104, %p105
      %s107 = ssub.s32 %s31, %s50
      %s108 = ssub.s32 %s33, %s42
      %s109 = sor.u32 %s107, %s108
      %p110 = scmp.eq.s32.totalorder %s109, 0
      %s112 = sadd.s32 %s111, 1
      %s113 = scalar_select %p110, %s111, %s112
      %p116 = pneg %p110
      %p117 = scmp.eq.s32.totalorder %s24, 1
      %p118 = por %p116, %p117
      %p119 = scmp.ne.s32.totalorder %s111, %s114
      %p120 = scmp.eq.s32.totalorder %s24, 0
      %p121 = por %p119, %p120
      %p122 = scmp.ne.s32.totalorder %s111, %s114
      %p123 = scmp.eq.s32.totalorder %s29, 1
      %p124 = por %p122, %p123
      %p125 = scmp.ne.s32.totalorder %s114, %s115
      %p126 = scmp.eq.s32.totalorder %s29, 0
      %p127 = por %p125, %p126
      %p128 = scmp.ne.s32.totalorder %s114, %s115
      %p129 = scmp.eq.s32.totalorder %s30, 1
      %p130 = por %p128, %p129
      %p132 = scmp.ne.s32.totalorder %s115, %s131
      %p133 = scmp.eq.s32.totalorder %s30, 0
      %p134 = por %p132, %p133
      %s135 = ssub.s32 %s32, %s46
      %p136 = scmp.eq.s32.totalorder %s135, 0
      %s138 = sadd.s32 %s137, 1
      %s139 = scalar_select %p136, %s137, %s138
      %p142 = pneg %p136
      %p143 = scmp.eq.s32.totalorder %s24, 1
      %p144 = por %p142, %p143
      %p145 = scmp.ne.s32.totalorder %s137, %s140
      %p146 = scmp.eq.s32.totalorder %s24, 0
      %p147 = por %p145, %p146
      %p148 = scmp.ne.s32.totalorder %s137, %s140
      %p149 = scmp.eq.s32.totalorder %s29, 1
      %p150 = por %p148, %p149
      %p151 = scmp.ne.s32.totalorder %s140, %s141
      %p152 = scmp.eq.s32.totalorder %s29, 0
      %p153 = por %p151, %p152
      %p154 = scmp.ne.s32.totalorder %s140, %s141
      %p155 = scmp.eq.s32.totalorder %s30, 1
      %p156 = por %p154, %p155
      %p158 = scmp.ne.s32.totalorder %s141, %s157
      %p159 = scmp.eq.s32.totalorder %s30, 0
      %p160 = por %p158, %p159
      %s161 = ssub.s32 %s32, %s46
      %p162 = scmp.eq.s32.totalorder %s161, 0
      %s164 = sadd.s32 %s163, 1
      %s165 = scalar_select %p162, %s163, %s164
      %p168 = pneg %p162
      %p169 = scmp.eq.s32.totalorder %s24, 1
      %p170 = por %p168, %p169
      %p171 = scmp.ne.s32.totalorder %s163, %s166
      %p172 = scmp.eq.s32.totalorder %s24, 0
      %p173 = por %p171, %p172
      %p174 = scmp.ne.s32.totalorder %s163, %s166
      %p175 = scmp.eq.s32.totalorder %s29, 1
      %p176 = por %p174, %p175
      %p177 = scmp.ne.s32.totalorder %s166, %s167
      %p178 = scmp.eq.s32.totalorder %s29, 0
      %p179 = por %p177, %p178
      %p180 = scmp.ne.s32.totalorder %s166, %s167
      %p181 = scmp.eq.s32.totalorder %s30, 1
      %p182 = por %p180, %p181
      %p184 = scmp.ne.s32.totalorder %s167, %s183
      %p185 = scmp.eq.s32.totalorder %s30, 0
      %p186 = por %p184, %p185
      %s187 = ssub.s32 %s33, %s42
      %p188 = scmp.eq.s32.totalorder %s187, 0
      %s190 = sadd.s32 %s189, 1
      %s191 = scalar_select %p188, %s189, %s190
      %p194 = pneg %p188
      %p195 = scmp.eq.s32.totalorder %s24, 1
      %p196 = por %p194, %p195
      %p197 = scmp.ne.s32.totalorder %s189, %s192
      %p198 = scmp.eq.s32.totalorder %s24, 0
      %p199 = por %p197, %p198
      %p200 = scmp.ne.s32.totalorder %s189, %s192
      %p201 = scmp.eq.s32.totalorder %s29, 1
      %p202 = por %p200, %p201
      %p203 = scmp.ne.s32.totalorder %s192, %s193
      %p204 = scmp.eq.s32.totalorder %s29, 0
      %p205 = por %p203, %p204
      %p206 = scmp.ne.s32.totalorder %s192, %s193
      %p207 = scmp.eq.s32.totalorder %s30, 1
      %p208 = por %p206, %p207
      %p210 = scmp.ne.s32.totalorder %s193, %s209
      %p211 = scmp.eq.s32.totalorder %s30, 0
      %p212 = por %p210, %p211
      %s213 = ssub.s32 %s33, %s42
      %p214 = scmp.eq.s32.totalorder %s213, 0
      %s216 = sadd.s32 %s215, 1
      %s217 = scalar_select %p214, %s215, %s216
      %p220 = pneg %p214
      %p221 = scmp.eq.s32.totalorder %s24, 1
      %p222 = por %p220, %p221
      %p223 = scmp.ne.s32.totalorder %s215, %s218
      %p224 = scmp.eq.s32.totalorder %s24, 0
      %p225 = por %p223, %p224
      %p226 = scmp.ne.s32.totalorder %s215, %s218
      %p227 = scmp.eq.s32.totalorder %s29, 1
      %p228 = por %p226, %p227
      %p229 = scmp.ne.s32.totalorder %s218, %s219
      %p230 = scmp.eq.s32.totalorder %s29, 0
      %p231 = por %p229, %p230
      %p232 = scmp.ne.s32.totalorder %s218, %s219
      %p233 = scmp.eq.s32.totalorder %s30, 1
      %p234 = por %p232, %p233
      %p236 = scmp.ne.s32.totalorder %s219, %s235
      %p237 = scmp.eq.s32.totalorder %s30, 0
      %p238 = por %p236, %p237
      %s239 = ssub.s32 %s31, %s50
      %s240 = ssub.s32 %s32, %s46
      %s241 = sor.u32 %s239, %s240
      %p242 = scmp.eq.s32.totalorder %s241, 0
      %s244 = sadd.s32 %s243, 1
      %s245 = scalar_select %p242, %s243, %s244
      %p248 = pneg %p242
      %p249 = scmp.eq.s32.totalorder %s24, 1
      %p250 = por %p248, %p249
      %p251 = scmp.ne.s32.totalorder %s243, %s246
      %p252 = scmp.eq.s32.totalorder %s24, 0
      %p253 = por %p251, %p252
      %p254 = scmp.ne.s32.totalorder %s243, %s246
      %p255 = scmp.eq.s32.totalorder %s29, 1
      %p256 = por %p254, %p255
      %p257 = scmp.ne.s32.totalorder %s246, %s247
      %p258 = scmp.eq.s32.totalorder %s29, 0
      %p259 = por %p257, %p258
      %p260 = scmp.ne.s32.totalorder %s246, %s247
      %p261 = scmp.eq.s32.totalorder %s30, 1
      %p262 = por %p260, %p261
      %p264 = scmp.ne.s32.totalorder %s247, %s263
      %p265 = scmp.eq.s32.totalorder %s30, 0
      %p266 = por %p264, %p265
      %p267 = scmp.le.s32.totalorder 1, %s24
      %p268 = scmp.lt.s32.totalorder %s24, 3
      %p269 = pnand %p267, %p268
      %p270 = pneg %p269
      // Predicated region
      $region9: #{rotary_causal_self_attention.8} parent=5 // pred_check
        _
      $region10: #{rotary_causal_self_attention.8} parent=5 // pred_check_branch
        %272 = sbr.rel (%p269) target = $region12
      $region11: #{rotary_causal_self_attention.8} parent=5 // pred_region
        %s273 = ssub.s32 %s24, 1
        // Predicated region
        $region13: #{rotary_causal_self_attention.8} parent=11 // pred_check
          %p274 = pneg %p153
        $region14: #{rotary_causal_self_attention.8} parent=11 // pred_check_branch
          %276 = sbr.rel (%p274) target = $region16
        $region15: #{rotary_causal_self_attention.8} parent=11 // pred_region
          %s277 = smul.u32 2, %s35
          %s279 = ssub.s32 256, 256
          %280 = vsyncadd [#allocation13], %s279
          %s281 = smul.addr %s277, 128
          %s282 = scalar_lea.hbm %s3, %s281
          %s283 = sshll.u32 [#allocation12], 4
          %s284 = int_to_ptr.vmem [resolvable:$true] %s283
          %289 = dma.hbm_to_vmem [thread:$0]  %s282, 256, %s284, [#allocation13], 128, 128, 8
        $region16: #{rotary_causal_self_attention.8} parent=11 // pred_fallthru
          _
        // Predicated region
        $region17: #{rotary_causal_self_attention.8} parent=11 // pred_check
          %p290 = pneg %p179
        $region18: #{rotary_causal_self_attention.8} parent=11 // pred_check_branch
          %292 = sbr.rel (%p290) target = $region20
        $region19: #{rotary_causal_self_attention.8} parent=11 // pred_region
          %s293 = smul.u32 2, %s35
          %s295 = ssub.s32 256, 256
          %296 = vsyncadd [#allocation13], %s295
          %s297 = smul.addr %s293, 128
          %s298 = scalar_lea.hbm %s4, %s297
          %s299 = sshll.u32 [#allocation14], 4
          %s300 = int_to_ptr.vmem [resolvable:$true] %s299
          %305 = dma.hbm_to_vmem [thread:$0]  %s298, 256, %s300, [#allocation13], 128, 128, 8
        $region20: #{rotary_causal_self_attention.8} parent=11 // pred_fallthru
          _
        // Predicated region
        $region21: #{rotary_causal_self_attention.8} parent=11 // pred_check
          %p306 = pneg %p205
        $region22: #{rotary_causal_self_attention.8} parent=11 // pred_check_branch
          %308 = sbr.rel (%p306) target = $region24
        $region23: #{rotary_causal_self_attention.8} parent=11 // pred_region
          %s309 = smul.u32 2, %s36
          %s311 = ssub.s32 256, 256
          %312 = vsyncadd [#allocation16], %s311
          %s313 = smul.addr %s309, 128
          %s314 = scalar_lea.hbm %s5, %s313
          %s315 = sshll.u32 [#allocation15], 4
          %s316 = int_to_ptr.vmem [resolvable:$true] %s315
          %321 = dma.hbm_to_vmem [thread:$0]  %s314, 256, %s316, [#allocation16], 128, 128, 8
        $region24: #{rotary_causal_self_attention.8} parent=11 // pred_fallthru
          _
        // Predicated region
        $region25: #{rotary_causal_self_attention.8} parent=11 // pred_check
          %p322 = pneg %p231
        $region26: #{rotary_causal_self_attention.8} parent=11 // pred_check_branch
          %324 = sbr.rel (%p322) target = $region28
        $region27: #{rotary_causal_self_attention.8} parent=11 // pred_region
          %s325 = smul.u32 2, %s36
          %s327 = ssub.s32 256, 256
          %328 = vsyncadd [#allocation16], %s327
          %s329 = smul.addr %s325, 128
          %s330 = scalar_lea.hbm %s6, %s329
          %s331 = sshll.u32 [#allocation17], 4
          %s332 = int_to_ptr.vmem [resolvable:$true] %s331
          %337 = dma.hbm_to_vmem [thread:$0]  %s330, 256, %s332, [#allocation16], 128, 128, 8
        $region28: #{rotary_causal_self_attention.8} parent=11 // pred_fallthru
          _
      $region12: #{rotary_causal_self_attention.8} parent=5 // pred_fallthru
        _
      %p338 = scmp.lt.s32.totalorder %s24, 2
      // Predicated region
      $region29: #{rotary_causal_self_attention.8} parent=5 // pred_check
        %p339 = pneg %p338
      $region30: #{rotary_causal_self_attention.8} parent=5 // pred_check_branch
        %341 = sbr.rel (%p339) target = $region32
      $region31: #{rotary_causal_self_attention.8} parent=5 // pred_region
        // Predicated region
        $region33: #{rotary_causal_self_attention.8} parent=31 // pred_check
          %p342 = pneg %p65
        $region34: #{rotary_causal_self_attention.8} parent=31 // pred_check_branch
          %344 = sbr.rel (%p342) target = $region36
        $region35: #{rotary_causal_self_attention.8} parent=31 // pred_region
          %s345 = sand.u32 %s55, 1
          %s346 = scalar_lea.sflag [#allocation7], %s345
          %s347 = sand.u32 %s55, 1
          %s348 = smul.addr %s347, 16
          %s349 = scalar_lea.vmem [#allocation6], %s348
          %s350 = smul.u32 2, %s32
          %s352 = ssub.s32 256, 256
          %353 = vsyncadd %s346, %s352
          %s354 = smul.addr %s31, 2
          %s355 = sadd.s32 %s350, %s354
          %s356 = smul.addr %s355, 128
          %s357 = scalar_lea.hbm %s0, %s356
          %s358 = sshll.u32 %s349, 4
          %s359 = int_to_ptr.vmem [resolvable:$true] %s358
          %364 = dma.hbm_to_vmem [thread:$0]  %s357, 256, %s359, %s346, 128, 128, 8
        $region36: #{rotary_causal_self_attention.8} parent=31 // pred_fallthru
          _
        // Predicated region
        $region37: #{rotary_causal_self_attention.8} parent=31 // pred_check
          %p365 = pneg %p93
        $region38: #{rotary_causal_self_attention.8} parent=31 // pred_check_branch
          %367 = sbr.rel (%p365) target = $region40
        $region39: #{rotary_causal_self_attention.8} parent=31 // pred_region
          %s368 = sand.u32 %s24, 1
          %s369 = scalar_lea.sflag [#allocation10], %s368
          %s370 = sand.u32 %s83, 1
          %s371 = smul.addr %s370, 16
          %s372 = scalar_lea.vmem [#allocation9], %s371
          %s373 = smul.u32 2, %s33
          %s375 = ssub.s32 256, 256
          %376 = vsyncadd %s369, %s375
          %s377 = smul.addr %s31, 2
          %s378 = sadd.s32 %s373, %s377
          %s379 = smul.addr %s378, 128
          %s380 = scalar_lea.hbm %s1, %s379
          %s381 = sshll.u32 %s372, 4
          %s382 = int_to_ptr.vmem [resolvable:$true] %s381
          %387 = dma.hbm_to_vmem [thread:$0]  %s380, 256, %s382, %s369, 128, 128, 8
        $region40: #{rotary_causal_self_attention.8} parent=31 // pred_fallthru
          _
        // Predicated region
        $region41: #{rotary_causal_self_attention.8} parent=31 // pred_check
          %p388 = pneg %p121
        $region42: #{rotary_causal_self_attention.8} parent=31 // pred_check_branch
          %390 = sbr.rel (%p388) target = $region44
        $region43: #{rotary_causal_self_attention.8} parent=31 // pred_region
          %s391 = sand.u32 %s24, 1
          %s392 = scalar_lea.sflag [#allocation10], %s391
          %s393 = sand.u32 %s111, 1
          %s394 = smul.addr %s393, 16
          %s395 = scalar_lea.vmem [#allocation11], %s394
          %s396 = smul.u32 2, %s33
          %s398 = ssub.s32 256, 256
          %399 = vsyncadd %s392, %s398
          %s400 = smul.addr %s31, 2
          %s401 = sadd.s32 %s396, %s400
          %s402 = smul.addr %s401, 128
          %s403 = scalar_lea.hbm %s2, %s402
          %s404 = sshll.u32 %s395, 4
          %s405 = int_to_ptr.vmem [resolvable:$true] %s404
          %410 = dma.hbm_to_vmem [thread:$0]  %s403, 256, %s405, %s392, 128, 128, 8
        $region44: #{rotary_causal_self_attention.8} parent=31 // pred_fallthru
          _
      $region32: #{rotary_causal_self_attention.8} parent=5 // pred_fallthru
        _
      %p411 = scmp.le.s32.totalorder 1, %s24
      %p412 = scmp.lt.s32.totalorder %s24, 3
      %p413 = pnand %p411, %p412
      %p414 = pneg %p413
      // Predicated region
      $region45: #{rotary_causal_self_attention.8} parent=5 // pred_check
        _
      $region46: #{rotary_causal_self_attention.8} parent=5 // pred_check_branch
        %416 = sbr.rel (%p413) target = $region48
      $region47: #{rotary_causal_self_attention.8} parent=5 // pred_region
        %s417 = ssub.s32 %s24, 1
        %s418 = sand.u32 %s58, 1
        %s419 = scalar_lea.sflag [#allocation7], %s418
        %s420 = sand.u32 %s58, 1
        %s421 = smul.addr %s420, 16
        %s422 = scalar_lea.vmem [#allocation6], %s421
        // Predicated region
        $region49: #{rotary_causal_self_attention.8} parent=47 // pred_check
          %p423 = pneg %p71
        $region50: #{rotary_causal_self_attention.8} parent=47 // pred_check_branch
          %425 = sbr.rel (%p423) target = $region52
        $region51: #{rotary_causal_self_attention.8} parent=47 // pred_region
          %426 = dma.done %s419, 256
        $region52: #{rotary_causal_self_attention.8} parent=47 // pred_fallthru
          _
        %s427 = sand.u32 %s29, 1
        %s428 = scalar_lea.sflag [#allocation10], %s427
        %s429 = sand.u32 %s86, 1
        %s430 = smul.addr %s429, 16
        %s431 = scalar_lea.vmem [#allocation9], %s430
        // Predicated region
        $region53: #{rotary_causal_self_attention.8} parent=47 // pred_check
          %p432 = pneg %p99
        $region54: #{rotary_causal_self_attention.8} parent=47 // pred_check_branch
          %434 = sbr.rel (%p432) target = $region56
        $region55: #{rotary_causal_self_attention.8} parent=47 // pred_region
          %435 = dma.done %s428, 256
        $region56: #{rotary_causal_self_attention.8} parent=47 // pred_fallthru
          _
        %s436 = sand.u32 %s29, 1
        %s437 = scalar_lea.sflag [#allocation10], %s436
        %s438 = sand.u32 %s114, 1
        %s439 = smul.addr %s438, 16
        %s440 = scalar_lea.vmem [#allocation11], %s439
        // Predicated region
        $region57: #{rotary_causal_self_attention.8} parent=47 // pred_check
          %p441 = pneg %p127
        $region58: #{rotary_causal_self_attention.8} parent=47 // pred_check_branch
          %443 = sbr.rel (%p441) target = $region60
        $region59: #{rotary_causal_self_attention.8} parent=47 // pred_region
          %444 = dma.done %s437, 256
        $region60: #{rotary_causal_self_attention.8} parent=47 // pred_fallthru
          _
        // Predicated region
        $region61: #{rotary_causal_self_attention.8} parent=47 // pred_check
          %p445 = pneg %p153
        $region62: #{rotary_causal_self_attention.8} parent=47 // pred_check_branch
          %447 = sbr.rel (%p445) target = $region64
        $region63: #{rotary_causal_self_attention.8} parent=47 // pred_region
          %448 = dma.done [#allocation13], 256
        $region64: #{rotary_causal_self_attention.8} parent=47 // pred_fallthru
          _
        // Predicated region
        $region65: #{rotary_causal_self_attention.8} parent=47 // pred_check
          %p449 = pneg %p179
        $region66: #{rotary_causal_self_attention.8} parent=47 // pred_check_branch
          %451 = sbr.rel (%p449) target = $region68
        $region67: #{rotary_causal_self_attention.8} parent=47 // pred_region
          %452 = dma.done [#allocation13], 256
        $region68: #{rotary_causal_self_attention.8} parent=47 // pred_fallthru
          _
        // Predicated region
        $region69: #{rotary_causal_self_attention.8} parent=47 // pred_check
          %p453 = pneg %p205
        $region70: #{rotary_causal_self_attention.8} parent=47 // pred_check_branch
          %455 = sbr.rel (%p453) target = $region72
        $region71: #{rotary_causal_self_attention.8} parent=47 // pred_region
          %456 = dma.done [#allocation16], 256
        $region72: #{rotary_causal_self_attention.8} parent=47 // pred_fallthru
          _
        // Predicated region
        $region73: #{rotary_causal_self_attention.8} parent=47 // pred_check
          %p457 = pneg %p231
        $region74: #{rotary_causal_self_attention.8} parent=47 // pred_check_branch
          %459 = sbr.rel (%p457) target = $region76
        $region75: #{rotary_causal_self_attention.8} parent=47 // pred_region
          %460 = dma.done [#allocation16], 256
        $region76: #{rotary_causal_self_attention.8} parent=47 // pred_fallthru
          _
        %s461 = sand.u32 %s58, 1
        %s462 = scalar_lea.sflag [#allocation7], %s461
        %s463 = sand.u32 %s58, 1
        %s464 = smul.addr %s463, 16
        %s465 = scalar_lea.vmem [#allocation6], %s464
        %p466 = pneg %p71
        %p467 = pneg %p68
        %s468 = sand.u32 %s29, 1
        %s469 = scalar_lea.sflag [#allocation10], %s468
        %s470 = sand.u32 %s86, 1
        %s471 = smul.addr %s470, 16
        %s472 = scalar_lea.vmem [#allocation9], %s471
        %p473 = pneg %p99
        %p474 = pneg %p96
        %s475 = sand.u32 %s29, 1
        %s476 = scalar_lea.sflag [#allocation10], %s475
        %s477 = sand.u32 %s114, 1
        %s478 = smul.addr %s477, 16
        %s479 = scalar_lea.vmem [#allocation11], %s478
        %p480 = pneg %p127
        %p481 = pneg %p124
        %p482 = pneg %p153
        %p483 = pneg %p150
        %p484 = pneg %p179
        %p485 = pneg %p176
        %p486 = pneg %p205
        %p487 = pneg %p202
        %p488 = pneg %p231
        %p489 = pneg %p228
        %p490 = pneg %p259
        %p491 = pneg %p256
        %s492 = sand.u32 %s246, 1
        %s493 = scalar_lea.sflag [#allocation8], %s492
        %s494 = sand.u32 %s246, 1
        %s495 = smul.addr %s494, 16
        %s496 = scalar_lea.vmem [#allocation18], %s495
        %s497 = smul.u32 2, %s35
        %s498 = smul.u32 2, %s36
        %s499 = smul.u32 2, %s36
        %s500 = smul.u32 2, %s35
        %s501 = smul.u32 2, %s35
        %s502 = smul.u32 2, %s36
        %s503 = smul.u32 2, %s36
        %s504 = smul.u32 2, %s35
        %s505 = smul.u32 %s35, 16
        %s506 = smul.u32 %s36, 16
        %p507 = scmp.eq.s32.totalorder %s36, 0
        // Predicated region
        $region77: #{rotary_causal_self_attention.8} parent=47 // pred_check
          %p508 = pneg %p507
        $region78: #{rotary_causal_self_attention.8} parent=47 // pred_check_branch
          %510 = sbr.rel (%p508) target = $region80
        $region79: #{rotary_causal_self_attention.8} parent=47 // pred_region
          %vm511 = vcmask 7168
          %512 = vst.msk [vmem:[#allocation4] sm:$0xff] %vm511, -inf
          %513 = vst.msk [vmem:[#allocation4 + $0x8] sm:$0xff] %vm511, -inf
          %514 = vst.msk [vmem:[#allocation4 + $0x10] sm:$0xff] %vm511, -inf
          %515 = vst.msk [vmem:[#allocation4 + $0x18] sm:$0xff] %vm511, -inf
          %516 = vst.msk [vmem:[#allocation4 + $0x20] sm:$0xff] %vm511, -inf
          %517 = vst.msk [vmem:[#allocation4 + $0x28] sm:$0xff] %vm511, -inf
          %518 = vst.msk [vmem:[#allocation4 + $0x30] sm:$0xff] %vm511, -inf
          %519 = vst.msk [vmem:[#allocation4 + $0x38] sm:$0xff] %vm511, -inf
          %520 = vst.msk [vmem:[#allocation5] sm:$0xff] %vm511, 0.0
          %521 = vst.msk [vmem:[#allocation5 + $0x8] sm:$0xff] %vm511, 0.0
          %522 = vst.msk [vmem:[#allocation5 + $0x10] sm:$0xff] %vm511, 0.0
          %523 = vst.msk [vmem:[#allocation5 + $0x18] sm:$0xff] %vm511, 0.0
          %524 = vst.msk [vmem:[#allocation5 + $0x20] sm:$0xff] %vm511, 0.0
          %525 = vst.msk [vmem:[#allocation5 + $0x28] sm:$0xff] %vm511, 0.0
          %526 = vst.msk [vmem:[#allocation5 + $0x30] sm:$0xff] %vm511, 0.0
          %527 = vst.msk [vmem:[#allocation5 + $0x38] sm:$0xff] %vm511, 0.0
          %vm528 = vcmask 64512
          %529 = vst.msk [vmem:[#allocation3] sm:$0xff] %vm528, 0.0
          %530 = vst.msk [vmem:[#allocation3 + $0x8] sm:$0xff] %vm528, 0.0
          %531 = vst.msk [vmem:[#allocation3 + $0x10] sm:$0xff] %vm528, 0.0
          %532 = vst.msk [vmem:[#allocation3 + $0x18] sm:$0xff] %vm528, 0.0
          %533 = vst.msk [vmem:[#allocation3 + $0x20] sm:$0xff] %vm528, 0.0
          %534 = vst.msk [vmem:[#allocation3 + $0x28] sm:$0xff] %vm528, 0.0
          %535 = vst.msk [vmem:[#allocation3 + $0x30] sm:$0xff] %vm528, 0.0
          %536 = vst.msk [vmem:[#allocation3 + $0x38] sm:$0xff] %vm528, 0.0
          %v537 = vld [vmem:[%s422] sm:$0xff]
          %v538 = vld [vmem:[%s422 + $0x8] sm:$0xff]
          %v539 = vld [vmem:[#allocation12] sm:$0xff]
          %v540 = vld [vmem:[#allocation12 + $0x8] sm:$0xff]
          %v541 = vld [vmem:[#allocation14] sm:$0xff]
          %v542 = vld [vmem:[#allocation14 + $0x8] sm:$0xff]
          %v543 = vmul.f32 %v537, %v539
          %v544 = vmul.f32 %v538, %v540
          %v545 = vsub.f32 0.0, %v537
          %v546 = vsub.f32 0.0, %v538
          %549 = vrot.lane.b32.xlu0 %v545, 124
          %v550 = vpop.permute.xlu0 %549
          %551 = vrot.lane.b32.xlu0 %v546, 124
          %v552 = vpop.permute.xlu0 %551
          %557 = vrot.lane.b32.xlu0 %v537, 4
          %v558 = vpop.permute.xlu0 %557
          %559 = vrot.lane.b32.xlu0 %v538, 4
          %v560 = vpop.permute.xlu0 %559
          %vm563 = vcmask 31744
          %v564 = vsel %vm563, %v550, %v558
          %v565 = vsel %vm563, %v552, %v560
          %v566 = vsel %vm528, %v564, %v550
          %v567 = vsel %vm528, %v565, %v552
          %vm568 = vcmask 97280
          %v569 = vsel %vm568, %v566, %v558
          %v570 = vsel %vm568, %v567, %v560
          %vm571 = vcmask 130048
          %v572 = vsel %vm571, %v569, %v550
          %v573 = vsel %vm571, %v570, %v552
          %vm574 = vcmask 162816
          %v575 = vsel %vm574, %v572, %v558
          %v576 = vsel %vm574, %v573, %v560
          %vm577 = vcmask 195584
          %v578 = vsel %vm577, %v575, %v550
          %v579 = vsel %vm577, %v576, %v552
          %vm580 = vcmask 228352
          %v581 = vsel %vm580, %v578, %v558
          %v582 = vsel %vm580, %v579, %v560
          %v583 = vmul.f32 %v581, %v541
          %v584 = vmul.f32 %v582, %v542
          %v585 = vadd.f32 %v543, %v583
          %v586 = vadd.f32 %v544, %v584
          %v587 = vmul.f32 %v585, 0.35355338
          %v588 = vmul.f32 %v586, 0.35355338
          %vm589 = vcmask 261120
          %590 = vst.msk [vmem:[#allocation2] sm:$0xff] %vm589, %v587
          %591 = vst.msk [vmem:[#allocation2 + $0x8] sm:$0xff] %vm589, %v588
        $region80: #{rotary_causal_self_attention.8} parent=47 // pred_fallthru
          _
        %s592 = sadd.s32 %s505, 15
        %p593 = scmp.le.s32.totalorder %s506, %s592
        // Predicated region
        $region81: #{rotary_causal_self_attention.8} parent=47 // pred_check
          %p594 = pneg %p593
        $region82: #{rotary_causal_self_attention.8} parent=47 // pred_check_branch
          %596 = sbr.rel (%p594) target = $region84
        $region83: #{rotary_causal_self_attention.8} parent=47 // pred_region
          %v597 = vld [vmem:[%s431] sm:$0xff]
          %v598 = vld [vmem:[%s431 + $0x8] sm:$0xff]
          %v599 = vld [vmem:[#allocation15] sm:$0xff]
          %v600 = vld [vmem:[#allocation15 + $0x8] sm:$0xff]
          %v601 = vld [vmem:[#allocation17] sm:$0xff]
          %v602 = vld [vmem:[#allocation17 + $0x8] sm:$0xff]
          %v603 = vmul.f32 %v597, %v599
          %v604 = vmul.f32 %v598, %v600
          %v605 = vsub.f32 0.0, %v597
          %v606 = vsub.f32 0.0, %v598
          %609 = vrot.lane.b32.xlu0 %v605, 124
          %v610 = vpop.permute.xlu0 %609
          %611 = vrot.lane.b32.xlu0 %v606, 124
          %v612 = vpop.permute.xlu0 %611
          %617 = vrot.lane.b32.xlu0 %v597, 4
          %v618 = vpop.permute.xlu0 %617
          %619 = vrot.lane.b32.xlu0 %v598, 4
          %v620 = vpop.permute.xlu0 %619
          %vm623 = vcmask 31744
          %v624 = vsel %vm623, %v610, %v618
          %v625 = vsel %vm623, %v612, %v620
          %vm626 = vcmask 64512
          %v627 = vsel %vm626, %v624, %v610
          %v628 = vsel %vm626, %v625, %v612
          %vm629 = vcmask 97280
          %v630 = vsel %vm629, %v627, %v618
          %v631 = vsel %vm629, %v628, %v620
          %vm632 = vcmask 130048
          %v633 = vsel %vm632, %v630, %v610
          %v634 = vsel %vm632, %v631, %v612
          %vm635 = vcmask 162816
          %v636 = vsel %vm635, %v633, %v618
          %v637 = vsel %vm635, %v634, %v620
          %vm638 = vcmask 195584
          %v639 = vsel %vm638, %v636, %v610
          %v640 = vsel %vm638, %v637, %v612
          %vm641 = vcmask 228352
          %v642 = vsel %vm641, %v639, %v618
          %v643 = vsel %vm641, %v640, %v620
          %v644 = vmul.f32 %v642, %v601
          %v645 = vmul.f32 %v643, %v602
          %v646 = vadd.f32 %v603, %v644
          %v647 = vadd.f32 %v604, %v645
          %v648 = vld [vmem:[%s440] sm:$0xff]
          %v649 = vld [vmem:[%s440 + $0x8] sm:$0xff]
          %v650 = vld [vmem:[#allocation2] sm:$0xff]
          %v651 = vld [vmem:[#allocation2 + $0x8] sm:$0xff]
          %v652 = vlaneseq
          %v653 = vshrl.u32 %v652, 7
          %v654 = vadd.s32 %v653, 8
          %v655 = vstv %s505
          %v656 = vadd.s32 %v653, %v655
          %v657 = vadd.s32 %v654, %v655
          %v658 = vlaneseq
          %v659 = vand.u32 %v658, 127
          %v660 = vstv %s506
          %v661 = vadd.s32 %v659, %v660
          %vm662 = vcmp.le.s32.totalorder %v661, %v656
          %vm663 = vcmp.le.s32.totalorder %v661, %v657
          %v665 = vsel %vm626, %v650, 0
          %v668 = vsel %vm626, %v651, 0
          %v671 = vsel %vm626, %v646, 0
          %v674 = vsel %vm626, %v647, 0
          %676 = vmatprep.subr.mxu0 0.0
          %677 = vmatpush1.xpose.msra.mxu0 %v671
          %678 = vmatprep.subr.mxu0 0.0
          %679 = vmatpush1.xpose.msra.mxu0 %v674
          %680 = vmatprep.subr.mxu0 0.0
          %681 = vmatpush1.xpose.msra.mxu0 0.0
          %682 = vmatprep.subr.mxu0 0.0
          %683 = vmatpush1.xpose.msra.mxu0 0.0
          %684 = vmatprep.subr.mxu0 0.0
          %685 = vmatpush1.xpose.msra.mxu0 0.0
          %686 = vmatprep.subr.mxu0 0.0
          %687 = vmatpush1.xpose.msra.mxu0 0.0
          %688 = vmatprep.subr.mxu0 0.0
          %689 = vmatpush1.xpose.msra.mxu0 0.0
          %690 = vmatprep.subr.mxu0 0.0
          %691 = vmatpush1.xpose.msra.mxu0 0.0
          %692 = vmatprep.subr.mxu0 0.0
          %693 = vmatpush1.xpose.msra.mxu0 0.0
          %694 = vmatprep.subr.mxu0 0.0
          %695 = vmatpush1.xpose.msra.mxu0 0.0
          %696 = vmatprep.subr.mxu0 0.0
          %697 = vmatpush1.xpose.msra.mxu0 0.0
          %698 = vmatprep.subr.mxu0 0.0
          %699 = vmatpush1.xpose.msra.mxu0 0.0
          %700 = vmatprep.subr.mxu0 0.0
          %701 = vmatpush1.xpose.msra.mxu0 0.0
          %702 = vmatprep.subr.mxu0 0.0
          %703 = vmatpush1.xpose.msra.mxu0 0.0
          %704 = vmatprep.subr.mxu0 0.0
          %705 = vmatpush1.xpose.msra.mxu0 0.0
          %706 = vmatprep.subr.mxu0 0.0
          %707 = vmatpush1.xpose.msra.mxu0 0.0
          %708 = vmatprep.subr.mxu0 0.0
          %709 = vmatpush1.xpose.msra.mxu0 0.0
          %710 = vmatprep.subr.mxu0 0.0
          %711 = vmatpush1.xpose.msra.mxu0 0.0
          %712 = vmatprep.subr.mxu0 0.0
          %713 = vmatpush1.xpose.msra.mxu0 0.0
          %714 = vmatprep.subr.mxu0 0.0
          %715 = vmatpush1.xpose.msra.mxu0 0.0
          %716 = vmatprep.subr.mxu0 0.0
          %717 = vmatpush1.xpose.msra.mxu0 0.0
          %718 = vmatprep.subr.mxu0 0.0
          %719 = vmatpush1.xpose.msra.mxu0 0.0
          %720 = vmatprep.subr.mxu0 0.0
          %721 = vmatpush1.xpose.msra.mxu0 0.0
          %722 = vmatprep.subr.mxu0 0.0
          %723 = vmatpush1.xpose.msra.mxu0 0.0
          %724 = vmatprep.subr.mxu0 0.0
          %725 = vmatpush1.xpose.msra.mxu0 0.0
          %726 = vmatprep.subr.mxu0 0.0
          %727 = vmatpush1.xpose.msra.mxu0 0.0
          %728 = vmatprep.subr.mxu0 0.0
          %729 = vmatpush1.xpose.msra.mxu0 0.0
          %730 = vmatprep.subr.mxu0 0.0
          %731 = vmatpush1.xpose.msra.mxu0 0.0
          %732 = vmatprep.subr.mxu0 0.0
          %733 = vmatpush1.xpose.msra.mxu0 0.0
          %734 = vmatprep.subr.mxu0 0.0
          %735 = vmatpush1.xpose.msra.mxu0 0.0
          %736 = vmatprep.subr.mxu0 0.0
          %737 = vmatpush1.xpose.msra.mxu0 0.0
          %738 = vmatprep.subr.mxu0 0.0
          %739 = vmatpush1.xpose.msra.mxu0 0.0
          %740 = vmatprep.mubr.f32.mxu0 0.0
          %741 = vmatmul.mubr.f32.gmra.mrb[0].mxu0 %v665
          %v742 = vpop.f32.mrb[0].mxu0
          %v743 = vadd.f32 0.0, %v742
          %v744 = vpop.f32.mrb[0].mxu0
          %745 = vmatprep.mubr.f32.mxu0 0.0
          %746 = vmatmul.mubr.f32.gmra.mrb[0].mxu0 %v668
          %v747 = vpop.f32.mrb[0].mxu0
          %v748 = vadd.f32 0.0, %v747
          %v749 = vpop.f32.mrb[0].mxu0
          %750 = vdwg.mxu0
          %v751 = vsel %vm662, %v743, -1e+30
          %v752 = vsel %vm663, %v748, -1e+30
          %v753 = vld [vmem:[#allocation4] sm:$0xff]
          %v754 = vld [vmem:[#allocation4 + $0x8] sm:$0xff]
          %v755 = vsel %vm632, %v751, -inf
          %756 = vmax.xlane.f32.xlu0 %v755
          %v757 = vpop.xlane.xlu0 %756
          %v758 = vsel %vm632, %v752, -inf
          %759 = vmax.xlane.f32.xlu0 %v758
          %v760 = vpop.xlane.xlu0 %759
          %v761 = vmax.f32 %v753, %v757
          %v762 = vmax.f32 %v754, %v760
          %v763 = vsub.f32 %v753, %v761
          %v764 = vsub.f32 %v754, %v762
          %v765 = vmul.f32 %v763, 1.442695
          %v766 = vpow.pop %v765
          %v767 = vmul.f32 %v764, 1.442695
          %v768 = vpow.pop %v767
          %770 = vset.pattern.permute.xlu0 0
          %771 = vperm.xlu0 %770, %v761
          %v772 = vpop.permute.xlu0 %771
          %775 = vset.pattern.permute.xlu0 0
          %776 = vperm.xlu0 %775, %v762
          %v777 = vpop.permute.xlu0 %776
          %v779 = vsub.f32 %v751, %v772
          %v780 = vsub.f32 %v752, %v777
          %v781 = vmul.f32 %v779, 1.442695
          %v782 = vpow.pop %v781
          %v783 = vmul.f32 %v780, 1.442695
          %v784 = vpow.pop %v783
          %v785 = vld [vmem:[#allocation5] sm:$0xff]
          %v786 = vld [vmem:[#allocation5 + $0x8] sm:$0xff]
          %v787 = vmul.f32 %v766, %v785
          %v788 = vmul.f32 %v768, %v786
          %v789 = vsel %vm632, %v782, 0.0
          %790 = vadd.xlane.f32.xlu0 %v789
          %v791 = vpop.xlane.xlu0 %790
          %v792 = vsel %vm632, %v784, 0.0
          %793 = vadd.xlane.f32.xlu0 %v792
          %v794 = vpop.xlane.xlu0 %793
          %v795 = vadd.f32 %v787, %v791
          %v796 = vadd.f32 %v788, %v794
          %vm797 = vcmask 7168
          %798 = vst.msk [vmem:[#allocation5] sm:$0xff] %vm797, %v795
          %799 = vst.msk [vmem:[#allocation5 + $0x8] sm:$0xff] %vm797, %v796
          %v800 = vld [vmem:[#allocation3] sm:$0xff]
          %v801 = vld [vmem:[#allocation3 + $0x8] sm:$0xff]
          %803 = vset.pattern.permute.xlu0 0
          %804 = vperm.xlu0 %803, %v766
          %v805 = vpop.permute.xlu0 %804
          %808 = vset.pattern.permute.xlu0 0
          %809 = vperm.xlu0 %808, %v768
          %v810 = vpop.permute.xlu0 %809
          %v812 = vmul.f32 %v805, %v800
          %v813 = vmul.f32 %v810, %v801
          %v815 = vsel %vm632, %v782, 0
          %v818 = vsel %vm632, %v784, 0
          %820 = vmatprep.subr.mxu0 0.0
          %821 = vmatpush1.msra.mxu0 %v648
          %822 = vmatprep.subr.mxu0 0.0
          %823 = vmatpush1.msra.mxu0 %v649
          %824 = vmatprep.subr.mxu0 0.0
          %825 = vmatpush1.msra.mxu0 0.0
          %826 = vmatprep.subr.mxu0 0.0
          %827 = vmatpush1.msra.mxu0 0.0
          %828 = vmatprep.subr.mxu0 0.0
          %829 = vmatpush1.msra.mxu0 0.0
          %830 = vmatprep.subr.mxu0 0.0
          %831 = vmatpush1.msra.mxu0 0.0
          %832 = vmatprep.subr.mxu0 0.0
          %833 = vmatpush1.msra.mxu0 0.0
          %834 = vmatprep.subr.mxu0 0.0
          %835 = vmatpush1.msra.mxu0 0.0
          %836 = vmatprep.subr.mxu0 0.0
          %837 = vmatpush1.msra.mxu0 0.0
          %838 = vmatprep.subr.mxu0 0.0
          %839 = vmatpush1.msra.mxu0 0.0
          %840 = vmatprep.subr.mxu0 0.0
          %841 = vmatpush1.msra.mxu0 0.0
          %842 = vmatprep.subr.mxu0 0.0
          %843 = vmatpush1.msra.mxu0 0.0
          %844 = vmatprep.subr.mxu0 0.0
          %845 = vmatpush1.msra.mxu0 0.0
          %846 = vmatprep.subr.mxu0 0.0
          %847 = vmatpush1.msra.mxu0 0.0
          %848 = vmatprep.subr.mxu0 0.0
          %849 = vmatpush1.msra.mxu0 0.0
          %850 = vmatprep.subr.mxu0 0.0
          %851 = vmatpush1.msra.mxu0 0.0
          %852 = vmatprep.subr.mxu0 0.0
          %853 = vmatpush1.msra.mxu0 0.0
          %854 = vmatprep.subr.mxu0 0.0
          %855 = vmatpush1.msra.mxu0 0.0
          %856 = vmatprep.subr.mxu0 0.0
          %857 = vmatpush1.msra.mxu0 0.0
          %858 = vmatprep.subr.mxu0 0.0
          %859 = vmatpush1.msra.mxu0 0.0
          %860 = vmatprep.subr.mxu0 0.0
          %861 = vmatpush1.msra.mxu0 0.0
          %862 = vmatprep.subr.mxu0 0.0
          %863 = vmatpush1.msra.mxu0 0.0
          %864 = vmatprep.subr.mxu0 0.0
          %865 = vmatpush1.msra.mxu0 0.0
          %866 = vmatprep.subr.mxu0 0.0
          %867 = vmatpush1.msra.mxu0 0.0
          %868 = vmatprep.subr.mxu0 0.0
          %869 = vmatpush1.msra.mxu0 0.0
          %870 = vmatprep.subr.mxu0 0.0
          %871 = vmatpush1.msra.mxu0 0.0
          %872 = vmatprep.subr.mxu0 0.0
          %873 = vmatpush1.msra.mxu0 0.0
          %874 = vmatprep.subr.mxu0 0.0
          %875 = vmatpush1.msra.mxu0 0.0
          %876 = vmatprep.subr.mxu0 0.0
          %877 = vmatpush1.msra.mxu0 0.0
          %878 = vmatprep.subr.mxu0 0.0
          %879 = vmatpush1.msra.mxu0 0.0
          %880 = vmatprep.subr.mxu0 0.0
          %881 = vmatpush1.msra.mxu0 0.0
          %882 = vmatprep.subr.mxu0 0.0
          %883 = vmatpush1.msra.mxu0 0.0
          %884 = vmatprep.mubr.f32.mxu0 0.0
          %885 = vmatmul.mubr.f32.gmra.mrb[0].mxu0 %v815
          %v886 = vpop.f32.mrb[0].mxu0
          %v887 = vadd.f32 0.0, %v886
          %v888 = vpop.f32.mrb[0].mxu0
          %889 = vmatprep.mubr.f32.mxu0 0.0
          %890 = vmatmul.mubr.f32.gmra.mrb[0].mxu0 %v818
          %v891 = vpop.f32.mrb[0].mxu0
          %v892 = vadd.f32 0.0, %v891
          %v893 = vpop.f32.mrb[0].mxu0
          %894 = vdwg.mxu0
          %v895 = vadd.f32 %v812, %v887
          %v896 = vadd.f32 %v813, %v892
          %897 = vst.msk [vmem:[#allocation3] sm:$0xff] %vm626, %v895
          %898 = vst.msk [vmem:[#allocation3 + $0x8] sm:$0xff] %vm626, %v896
          %899 = vst.msk [vmem:[#allocation4] sm:$0xff] %vm797, %v761
          %900 = vst.msk [vmem:[#allocation4 + $0x8] sm:$0xff] %vm797, %v762
          %901 = vrot.lane.b32.xlu0 %v650, 120
          %v902 = vpop.permute.xlu0 %901
          %903 = vrot.lane.b32.xlu0 %v651, 120
          %v904 = vpop.permute.xlu0 %903
          %905 = vrot.lane.b32.xlu0 %v646, 120
          %v906 = vpop.permute.xlu0 %905
          %907 = vrot.lane.b32.xlu0 %v647, 120
          %v908 = vpop.permute.xlu0 %907
          %v909 = vsel %vm626, %v902, 0
          %v911 = vsel %vm626, %v904, 0
          %v913 = vsel %vm626, %v906, 0
          %v915 = vsel %vm626, %v908, 0
          %917 = vmatprep.subr.mxu0 0.0
          %918 = vmatpush1.xpose.msra.mxu0 %v913
          %919 = vmatprep.subr.mxu0 0.0
          %920 = vmatpush1.xpose.msra.mxu0 %v915
          %921 = vmatprep.subr.mxu0 0.0
          %922 = vmatpush1.xpose.msra.mxu0 0.0
          %923 = vmatprep.subr.mxu0 0.0
          %924 = vmatpush1.xpose.msra.mxu0 0.0
          %925 = vmatprep.subr.mxu0 0.0
          %926 = vmatpush1.xpose.msra.mxu0 0.0
          %927 = vmatprep.subr.mxu0 0.0
          %928 = vmatpush1.xpose.msra.mxu0 0.0
          %929 = vmatprep.subr.mxu0 0.0
          %930 = vmatpush1.xpose.msra.mxu0 0.0
          %931 = vmatprep.subr.mxu0 0.0
          %932 = vmatpush1.xpose.msra.mxu0 0.0
          %933 = vmatprep.subr.mxu0 0.0
          %934 = vmatpush1.xpose.msra.mxu0 0.0
          %935 = vmatprep.subr.mxu0 0.0
          %936 = vmatpush1.xpose.msra.mxu0 0.0
          %937 = vmatprep.subr.mxu0 0.0
          %938 = vmatpush1.xpose.msra.mxu0 0.0
          %939 = vmatprep.subr.mxu0 0.0
          %940 = vmatpush1.xpose.msra.mxu0 0.0
          %941 = vmatprep.subr.mxu0 0.0
          %942 = vmatpush1.xpose.msra.mxu0 0.0
          %943 = vmatprep.subr.mxu0 0.0
          %944 = vmatpush1.xpose.msra.mxu0 0.0
          %945 = vmatprep.subr.mxu0 0.0
          %946 = vmatpush1.xpose.msra.mxu0 0.0
          %947 = vmatprep.subr.mxu0 0.0
          %948 = vmatpush1.xpose.msra.mxu0 0.0
          %949 = vmatprep.subr.mxu0 0.0
          %950 = vmatpush1.xpose.msra.mxu0 0.0
          %951 = vmatprep.subr.mxu0 0.0
          %952 = vmatpush1.xpose.msra.mxu0 0.0
          %953 = vmatprep.subr.mxu0 0.0
          %954 = vmatpush1.xpose.msra.mxu0 0.0
          %955 = vmatprep.subr.mxu0 0.0
          %956 = vmatpush1.xpose.msra.mxu0 0.0
          %957 = vmatprep.subr.mxu0 0.0
          %958 = vmatpush1.xpose.msra.mxu0 0.0
          %959 = vmatprep.subr.mxu0 0.0
          %960 = vmatpush1.xpose.msra.mxu0 0.0
          %961 = vmatprep.subr.mxu0 0.0
          %962 = vmatpush1.xpose.msra.mxu0 0.0
          %963 = vmatprep.subr.mxu0 0.0
          %964 = vmatpush1.xpose.msra.mxu0 0.0
          %965 = vmatprep.subr.mxu0 0.0
          %966 = vmatpush1.xpose.msra.mxu0 0.0
          %967 = vmatprep.subr.mxu0 0.0
          %968 = vmatpush1.xpose.msra.mxu0 0.0
          %969 = vmatprep.subr.mxu0 0.0
          %970 = vmatpush1.xpose.msra.mxu0 0.0
          %971 = vmatprep.subr.mxu0 0.0
          %972 = vmatpush1.xpose.msra.mxu0 0.0
          %973 = vmatprep.subr.mxu0 0.0
          %974 = vmatpush1.xpose.msra.mxu0 0.0
          %975 = vmatprep.subr.mxu0 0.0
          %976 = vmatpush1.xpose.msra.mxu0 0.0
          %977 = vmatprep.subr.mxu0 0.0
          %978 = vmatpush1.xpose.msra.mxu0 0.0
          %979 = vmatprep.subr.mxu0 0.0
          %980 = vmatpush1.xpose.msra.mxu0 0.0
          %981 = vmatprep.mubr.f32.mxu0 0.0
          %982 = vmatmul.mubr.f32.gmra.mrb[0].mxu0 %v909
          %v983 = vpop.f32.mrb[0].mxu0
          %v984 = vadd.f32 0.0, %v983
          %v985 = vpop.f32.mrb[0].mxu0
          %986 = vmatprep.mubr.f32.mxu0 0.0
          %987 = vmatmul.mubr.f32.gmra.mrb[0].mxu0 %v911
          %v988 = vpop.f32.mrb[0].mxu0
          %v989 = vadd.f32 0.0, %v988
          %v990 = vpop.f32.mrb[0].mxu0
          %991 = vdwg.mxu0
          %v992 = vsel %vm662, %v984, -1e+30
          %v993 = vsel %vm663, %v989, -1e+30
          %s994 = scalar_lea.vmem [#allocation4], 16
          %v995 = vld [vmem:[%s994] sm:$0xff]
          %v996 = vld [vmem:[%s994 + $0x8] sm:$0xff]
          %v997 = vsel %vm632, %v992, -inf
          %998 = vmax.xlane.f32.xlu0 %v997
          %v999 = vpop.xlane.xlu0 %998
          %v1000 = vsel %vm632, %v993, -inf
          %1001 = vmax.xlane.f32.xlu0 %v1000
          %v1002 = vpop.xlane.xlu0 %1001
          %v1003 = vmax.f32 %v995, %v999
          %v1004 = vmax.f32 %v996, %v1002
          %v1005 = vsub.f32 %v995, %v1003
          %v1006 = vsub.f32 %v996, %v1004
          %v1007 = vmul.f32 %v1005, 1.442695
          %v1008 = vpow.pop %v1007
          %v1009 = vmul.f32 %v1006, 1.442695
          %v1010 = vpow.pop %v1009
          %1012 = vset.pattern.permute.xlu0 0
          %1013 = vperm.xlu0 %1012, %v1003
          %v1014 = vpop.permute.xlu0 %1013
          %1017 = vset.pattern.permute.xlu0 0
          %1018 = vperm.xlu0 %1017, %v1004
          %v1019 = vpop.permute.xlu0 %1018
          %v1021 = vsub.f32 %v992, %v1014
          %v1022 = vsub.f32 %v993, %v1019
          %v1023 = vmul.f32 %v1021, 1.442695
          %v1024 = vpow.pop %v1023
          %v1025 = vmul.f32 %v1022, 1.442695
          %v1026 = vpow.pop %v1025
          %s1027 = scalar_lea.vmem [#allocation5], 16
          %v1028 = vld [vmem:[%s1027] sm:$0xff]
          %v1029 = vld [vmem:[%s1027 + $0x8] sm:$0xff]
          %v1030 = vmul.f32 %v1008, %v1028
          %v1031 = vmul.f32 %v1010, %v1029
          %v1032 = vsel %vm632, %v1024, 0.0
          %1033 = vadd.xlane.f32.xlu0 %v1032
          %v1034 = vpop.xlane.xlu0 %1033
          %v1035 = vsel %vm632, %v1026, 0.0
          %1036 = vadd.xlane.f32.xlu0 %v1035
          %v1037 = vpop.xlane.xlu0 %1036
          %v1038 = vadd.f32 %v1030, %v1034
          %v1039 = vadd.f32 %v1031, %v1037
          %1040 = vst.msk [vmem:[%s1027] sm:$0xff] %vm797, %v1038
          %1041 = vst.msk [vmem:[%s1027 + $0x8] sm:$0xff] %vm797, %v1039
          %s1042 = scalar_lea.vmem [#allocation3], 16
          %v1043 = vld [vmem:[%s1042] sm:$0xff]
          %v1044 = vld [vmem:[%s1042 + $0x8] sm:$0xff]
          %1046 = vset.pattern.permute.xlu0 0
          %1047 = vperm.xlu0 %1046, %v1008
          %v1048 = vpop.permute.xlu0 %1047
          %1051 = vset.pattern.permute.xlu0 0
          %1052 = vperm.xlu0 %1051, %v1010
          %v1053 = vpop.permute.xlu0 %1052
          %v1055 = vmul.f32 %v1048, %v1043
          %v1056 = vmul.f32 %v1053, %v1044
          %1059 = vrot.lane.b32.xlu0 %v648, 120
          %v1060 = vpop.permute.xlu0 %1059
          %1061 = vrot.lane.b32.xlu0 %v649, 120
          %v1062 = vpop.permute.xlu0 %1061
          %v1066 = vsel %vm632, %v1024, 0
          %v1069 = vsel %vm632, %v1026, 0
          %1071 = vmatprep.subr.mxu0 0.0
          %1072 = vmatpush1.msra.mxu0 %v1060
          %1073 = vmatprep.subr.mxu0 0.0
          %1074 = vmatpush1.msra.mxu0 %v1062
          %1075 = vmatprep.subr.mxu0 0.0
          %1076 = vmatpush1.msra.mxu0 0.0
          %1077 = vmatprep.subr.mxu0 0.0
          %1078 = vmatpush1.msra.mxu0 0.0
          %1079 = vmatprep.subr.mxu0 0.0
          %1080 = vmatpush1.msra.mxu0 0.0
          %1081 = vmatprep.subr.mxu0 0.0
          %1082 = vmatpush1.msra.mxu0 0.0
          %1083 = vmatprep.subr.mxu0 0.0
          %1084 = vmatpush1.msra.mxu0 0.0
          %1085 = vmatprep.subr.mxu0 0.0
          %1086 = vmatpush1.msra.mxu0 0.0
          %1087 = vmatprep.subr.mxu0 0.0
          %1088 = vmatpush1.msra.mxu0 0.0
          %1089 = vmatprep.subr.mxu0 0.0
          %1090 = vmatpush1.msra.mxu0 0.0
          %1091 = vmatprep.subr.mxu0 0.0
          %1092 = vmatpush1.msra.mxu0 0.0
          %1093 = vmatprep.subr.mxu0 0.0
          %1094 = vmatpush1.msra.mxu0 0.0
          %1095 = vmatprep.subr.mxu0 0.0
          %1096 = vmatpush1.msra.mxu0 0.0
          %1097 = vmatprep.subr.mxu0 0.0
          %1098 = vmatpush1.msra.mxu0 0.0
          %1099 = vmatprep.subr.mxu0 0.0
          %1100 = vmatpush1.msra.mxu0 0.0
          %1101 = vmatprep.subr.mxu0 0.0
          %1102 = vmatpush1.msra.mxu0 0.0
          %1103 = vmatprep.subr.mxu0 0.0
          %1104 = vmatpush1.msra.mxu0 0.0
          %1105 = vmatprep.subr.mxu0 0.0
          %1106 = vmatpush1.msra.mxu0 0.0
          %1107 = vmatprep.subr.mxu0 0.0
          %1108 = vmatpush1.msra.mxu0 0.0
          %1109 = vmatprep.subr.mxu0 0.0
          %1110 = vmatpush1.msra.mxu0 0.0
          %1111 = vmatprep.subr.mxu0 0.0
          %1112 = vmatpush1.msra.mxu0 0.0
          %1113 = vmatprep.subr.mxu0 0.0
          %1114 = vmatpush1.msra.mxu0 0.0
          %1115 = vmatprep.subr.mxu0 0.0
          %1116 = vmatpush1.msra.mxu0 0.0
          %1117 = vmatprep.subr.mxu0 0.0
          %1118 = vmatpush1.msra.mxu0 0.0
          %1119 = vmatprep.subr.mxu0 0.0
          %1120 = vmatpush1.msra.mxu0 0.0
          %1121 = vmatprep.subr.mxu0 0.0
          %1122 = vmatpush1.msra.mxu0 0.0
          %1123 = vmatprep.subr.mxu0 0.0
          %1124 = vmatpush1.msra.mxu0 0.0
          %1125 = vmatprep.subr.mxu0 0.0
          %1126 = vmatpush1.msra.mxu0 0.0
          %1127 = vmatprep.subr.mxu0 0.0
          %1128 = vmatpush1.msra.mxu0 0.0
          %1129 = vmatprep.subr.mxu0 0.0
          %1130 = vmatpush1.msra.mxu0 0.0
          %1131 = vmatprep.subr.mxu0 0.0
          %1132 = vmatpush1.msra.mxu0 0.0
          %1133 = vmatprep.subr.mxu0 0.0
          %1134 = vmatpush1.msra.mxu0 0.0
          %1135 = vmatprep.mubr.f32.mxu0 0.0
          %1136 = vmatmul.mubr.f32.gmra.mrb[0].mxu0 %v1066
          %v1137 = vpop.f32.mrb[0].mxu0
          %v1138 = vadd.f32 0.0, %v1137
          %v1139 = vpop.f32.mrb[0].mxu0
          %1140 = vmatprep.mubr.f32.mxu0 0.0
          %1141 = vmatmul.mubr.f32.gmra.mrb[0].mxu0 %v1069
          %v1142 = vpop.f32.mrb[0].mxu0
          %v1143 = vadd.f32 0.0, %v1142
          %v1144 = vpop.f32.mrb[0].mxu0
          %1145 = vdwg.mxu0
          %v1146 = vadd.f32 %v1055, %v1138
          %v1147 = vadd.f32 %v1056, %v1143
          %1148 = vst.msk [vmem:[%s1042] sm:$0xff] %vm626, %v1146
          %1149 = vst.msk [vmem:[%s1042 + $0x8] sm:$0xff] %vm626, %v1147
          %1150 = vst.msk [vmem:[%s994] sm:$0xff] %vm797, %v1003
          %1151 = vst.msk [vmem:[%s994 + $0x8] sm:$0xff] %vm797, %v1004
          %1152 = vrot.lane.b32.xlu0 %v650, 112
          %v1153 = vpop.permute.xlu0 %1152
          %1154 = vrot.lane.b32.xlu0 %v651, 112
          %v1155 = vpop.permute.xlu0 %1154
          %1156 = vrot.lane.b32.xlu0 %v646, 112
          %v1157 = vpop.permute.xlu0 %1156
          %1158 = vrot.lane.b32.xlu0 %v647, 112
          %v1159 = vpop.permute.xlu0 %1158
          %v1160 = vsel %vm626, %v1153, 0
          %v1162 = vsel %vm626, %v1155, 0
          %v1164 = vsel %vm626, %v1157, 0
          %v1166 = vsel %vm626, %v1159, 0
          %1168 = vmatprep.subr.mxu0 0.0
          %1169 = vmatpush1.xpose.msra.mxu0 %v1164
          %1170 = vmatprep.subr.mxu0 0.0
          %1171 = vmatpush1.xpose.msra.mxu0 %v1166
          %1172 = vmatprep.subr.mxu0 0.0
          %1173 = vmatpush1.xpose.msra.mxu0 0.0
          %1174 = vmatprep.subr.mxu0 0.0
          %1175 = vmatpush1.xpose.msra.mxu0 0.0
          %1176 = vmatprep.subr.mxu0 0.0
          %1177 = vmatpush1.xpose.msra.mxu0 0.0
          %1178 = vmatprep.subr.mxu0 0.0
          %1179 = vmatpush1.xpose.msra.mxu0 0.0
          %1180 = vmatprep.subr.mxu0 0.0
          %1181 = vmatpush1.xpose.msra.mxu0 0.0
          %1182 = vmatprep.subr.mxu0 0.0
          %1183 = vmatpush1.xpose.msra.mxu0 0.0
          %1184 = vmatprep.subr.mxu0 0.0
          %1185 = vmatpush1.xpose.msra.mxu0 0.0
          %1186 = vmatprep.subr.mxu0 0.0
          %1187 = vmatpush1.xpose.msra.mxu0 0.0
          %1188 = vmatprep.subr.mxu0 0.0
          %1189 = vmatpush1.xpose.msra.mxu0 0.0
          %1190 = vmatprep.subr.mxu0 0.0
          %1191 = vmatpush1.xpose.msra.mxu0 0.0
          %1192 = vmatprep.subr.mxu0 0.0
          %1193 = vmatpush1.xpose.msra.mxu0 0.0
          %1194 = vmatprep.subr.mxu0 0.0
          %1195 = vmatpush1.xpose.msra.mxu0 0.0
          %1196 = vmatprep.subr.mxu0 0.0
          %1197 = vmatpush1.xpose.msra.mxu0 0.0
          %1198 = vmatprep.subr.mxu0 0.0
          %1199 = vmatpush1.xpose.msra.mxu0 0.0
          %1200 = vmatprep.subr.mxu0 0.0
          %1201 = vmatpush1.xpose.msra.mxu0 0.0
          %1202 = vmatprep.subr.mxu0 0.0
          %1203 = vmatpush1.xpose.msra.mxu0 0.0
          %1204 = vmatprep.subr.mxu0 0.0
          %1205 = vmatpush1.xpose.msra.mxu0 0.0
          %1206 = vmatprep.subr.mxu0 0.0
          %1207 = vmatpush1.xpose.msra.mxu0 0.0
          %1208 = vmatprep.subr.mxu0 0.0
          %1209 = vmatpush1.xpose.msra.mxu0 0.0
          %1210 = vmatprep.subr.mxu0 0.0
          %1211 = vmatpush1.xpose.msra.mxu0 0.0
          %1212 = vmatprep.subr.mxu0 0.0
          %1213 = vmatpush1.xpose.msra.mxu0 0.0
          %1214 = vmatprep.subr.mxu0 0.0
          %1215 = vmatpush1.xpose.msra.mxu0 0.0
          %1216 = vmatprep.subr.mxu0 0.0
          %1217 = vmatpush1.xpose.msra.mxu0 0.0
          %1218 = vmatprep.subr.mxu0 0.0
          %1219 = vmatpush1.xpose.msra.mxu0 0.0
          %1220 = vmatprep.subr.mxu0 0.0
          %1221 = vmatpush1.xpose.msra.mxu0 0.0
          %1222 = vmatprep.subr.mxu0 0.0
          %1223 = vmatpush1.xpose.msra.mxu0 0.0
          %1224 = vmatprep.subr.mxu0 0.0
          %1225 = vmatpush1.xpose.msra.mxu0 0.0
          %1226 = vmatprep.subr.mxu0 0.0
          %1227 = vmatpush1.xpose.msra.mxu0 0.0
          %1228 = vmatprep.subr.mxu0 0.0
          %1229 = vmatpush1.xpose.msra.mxu0 0.0
          %1230 = vmatprep.subr.mxu0 0.0
          %1231 = vmatpush1.xpose.msra.mxu0 0.0
          %1232 = vmatprep.mubr.f32.mxu0 0.0
          %1233 = vmatmul.mubr.f32.gmra.mrb[0].mxu0 %v1160
          %v1234 = vpop.f32.mrb[0].mxu0
          %v1235 = vadd.f32 0.0, %v1234
          %v1236 = vpop.f32.mrb[0].mxu0
          %1237 = vmatprep.mubr.f32.mxu0 0.0
          %1238 = vmatmul.mubr.f32.gmra.mrb[0].mxu0 %v1162
          %v1239 = vpop.f32.mrb[0].mxu0
          %v1240 = vadd.f32 0.0, %v1239
          %v1241 = vpop.f32.mrb[0].mxu0
          %1242 = vdwg.mxu0
          %v1243 = vsel %vm662, %v1235, -1e+30
          %v1244 = vsel %vm663, %v1240, -1e+30
          %s1245 = scalar_lea.vmem [#allocation4], 32
          %v1246 = vld [vmem:[%s1245] sm:$0xff]
          %v1247 = vld [vmem:[%s1245 + $0x8] sm:$0xff]
          %v1248 = vsel %vm632, %v1243, -inf
          %1249 = vmax.xlane.f32.xlu0 %v1248
          %v1250 = vpop.xlane.xlu0 %1249
          %v1251 = vsel %vm632, %v1244, -inf
          %1252 = vmax.xlane.f32.xlu0 %v1251
          %v1253 = vpop.xlane.xlu0 %1252
          %v1254 = vmax.f32 %v1246, %v1250
          %v1255 = vmax.f32 %v1247, %v1253
          %v1256 = vsub.f32 %v1246, %v1254
          %v1257 = vsub.f32 %v1247, %v1255
          %v1258 = vmul.f32 %v1256, 1.442695
          %v1259 = vpow.pop %v1258
          %v1260 = vmul.f32 %v1257, 1.442695
          %v1261 = vpow.pop %v1260
          %1263 = vset.pattern.permute.xlu0 0
          %1264 = vperm.xlu0 %1263, %v1254
          %v1265 = vpop.permute.xlu0 %1264
          %1268 = vset.pattern.permute.xlu0 0
          %1269 = vperm.xlu0 %1268, %v1255
          %v1270 = vpop.permute.xlu0 %1269
          %v1272 = vsub.f32 %v1243, %v1265
          %v1273 = vsub.f32 %v1244, %v1270
          %v1274 = vmul.f32 %v1272, 1.442695
          %v1275 = vpow.pop %v1274
          %v1276 = vmul.f32 %v1273, 1.442695
          %v1277 = vpow.pop %v1276
          %s1278 = scalar_lea.vmem [#allocation5], 32
          %v1279 = vld [vmem:[%s1278] sm:$0xff]
          %v1280 = vld [vmem:[%s1278 + $0x8] sm:$0xff]
          %v1281 = vmul.f32 %v1259, %v1279
          %v1282 = vmul.f32 %v1261, %v1280
          %v1283 = vsel %vm632, %v1275, 0.0
          %1284 = vadd.xlane.f32.xlu0 %v1283
          %v1285 = vpop.xlane.xlu0 %1284
          %v1286 = vsel %vm632, %v1277, 0.0
          %1287 = vadd.xlane.f32.xlu0 %v1286
          %v1288 = vpop.xlane.xlu0 %1287
          %v1289 = vadd.f32 %v1281, %v1285
          %v1290 = vadd.f32 %v1282, %v1288
          %1291 = vst.msk [vmem:[%s1278] sm:$0xff] %vm797, %v1289
          %1292 = vst.msk [vmem:[%s1278 + $0x8] sm:$0xff] %vm797, %v1290
          %s1293 = scalar_lea.vmem [#allocation3], 32
          %v1294 = vld [vmem:[%s1293] sm:$0xff]
          %v1295 = vld [vmem:[%s1293 + $0x8] sm:$0xff]
          %1297 = vset.pattern.permute.xlu0 0
          %1298 = vperm.xlu0 %1297, %v1259
          %v1299 = vpop.permute.xlu0 %1298
          %1302 = vset.pattern.permute.xlu0 0
          %1303 = vperm.xlu0 %1302, %v1261
          %v1304 = vpop.permute.xlu0 %1303
          %v1306 = vmul.f32 %v1299, %v1294
          %v1307 = vmul.f32 %v1304, %v1295
          %1308 = vrot.lane.b32.xlu0 %v648, 112
          %v1309 = vpop.permute.xlu0 %1308
          %1310 = vrot.lane.b32.xlu0 %v649, 112
          %v1311 = vpop.permute.xlu0 %1310
          %v1315 = vsel %vm632, %v1275, 0
          %v1318 = vsel %vm632, %v1277, 0
          %1320 = vmatprep.subr.mxu0 0.0
          %1321 = vmatpush1.msra.mxu0 %v1309
          %1322 = vmatprep.subr.mxu0 0.0
          %1323 = vmatpush1.msra.mxu0 %v1311
          %1324 = vmatprep.subr.mxu0 0.0
          %1325 = vmatpush1.msra.mxu0 0.0
          %1326 = vmatprep.subr.mxu0 0.0
          %1327 = vmatpush1.msra.mxu0 0.0
          %1328 = vmatprep.subr.mxu0 0.0
          %1329 = vmatpush1.msra.mxu0 0.0
          %1330 = vmatprep.subr.mxu0 0.0
          %1331 = vmatpush1.msra.mxu0 0.0
          %1332 = vmatprep.subr.mxu0 0.0
          %1333 = vmatpush1.msra.mxu0 0.0
          %1334 = vmatprep.subr.mxu0 0.0
          %1335 = vmatpush1.msra.mxu0 0.0
          %1336 = vmatprep.subr.mxu0 0.0
          %1337 = vmatpush1.msra.mxu0 0.0
          %1338 = vmatprep.subr.mxu0 0.0
          %1339 = vmatpush1.msra.mxu0 0.0
          %1340 = vmatprep.subr.mxu0 0.0
          %1341 = vmatpush1.msra.mxu0 0.0
          %1342 = vmatprep.subr.mxu0 0.0
          %1343 = vmatpush1.msra.mxu0 0.0
          %1344 = vmatprep.subr.mxu0 0.0
          %1345 = vmatpush1.msra.mxu0 0.0
          %1346 = vmatprep.subr.mxu0 0.0
          %1347 = vmatpush1.msra.mxu0 0.0
          %1348 = vmatprep.subr.mxu0 0.0
          %1349 = vmatpush1.msra.mxu0 0.0
          %1350 = vmatprep.subr.mxu0 0.0
          %1351 = vmatpush1.msra.mxu0 0.0
          %1352 = vmatprep.subr.mxu0 0.0
          %1353 = vmatpush1.msra.mxu0 0.0
          %1354 = vmatprep.subr.mxu0 0.0
          %1355 = vmatpush1.msra.mxu0 0.0
          %1356 = vmatprep.subr.mxu0 0.0
          %1357 = vmatpush1.msra.mxu0 0.0
          %1358 = vmatprep.subr.mxu0 0.0
          %1359 = vmatpush1.msra.mxu0 0.0
          %1360 = vmatprep.subr.mxu0 0.0
          %1361 = vmatpush1.msra.mxu0 0.0
          %1362 = vmatprep.subr.mxu0 0.0
          %1363 = vmatpush1.msra.mxu0 0.0
          %1364 = vmatprep.subr.mxu0 0.0
          %1365 = vmatpush1.msra.mxu0 0.0
          %1366 = vmatprep.subr.mxu0 0.0
          %1367 = vmatpush1.msra.mxu0 0.0
          %1368 = vmatprep.subr.mxu0 0.0
          %1369 = vmatpush1.msra.mxu0 0.0
          %1370 = vmatprep.subr.mxu0 0.0
          %1371 = vmatpush1.msra.mxu0 0.0
          %1372 = vmatprep.subr.mxu0 0.0
          %1373 = vmatpush1.msra.mxu0 0.0
          %1374 = vmatprep.subr.mxu0 0.0
          %1375 = vmatpush1.msra.mxu0 0.0
          %1376 = vmatprep.subr.mxu0 0.0
          %1377 = vmatpush1.msra.mxu0 0.0
          %1378 = vmatprep.subr.mxu0 0.0
          %1379 = vmatpush1.msra.mxu0 0.0
          %1380 = vmatprep.subr.mxu0 0.0
          %1381 = vmatpush1.msra.mxu0 0.0
          %1382 = vmatprep.subr.mxu0 0.0
          %1383 = vmatpush1.msra.mxu0 0.0
          %1384 = vmatprep.mubr.f32.mxu0 0.0
          %1385 = vmatmul.mubr.f32.gmra.mrb[0].mxu0 %v1315
          %v1386 = vpop.f32.mrb[0].mxu0
          %v1387 = vadd.f32 0.0, %v1386
          %v1388 = vpop.f32.mrb[0].mxu0
          %1389 = vmatprep.mubr.f32.mxu0 0.0
          %1390 = vmatmul.mubr.f32.gmra.mrb[0].mxu0 %v1318
          %v1391 = vpop.f32.mrb[0].mxu0
          %v1392 = vadd.f32 0.0, %v1391
          %v1393 = vpop.f32.mrb[0].mxu0
          %1394 = vdwg.mxu0
          %v1395 = vadd.f32 %v1306, %v1387
          %v1396 = vadd.f32 %v1307, %v1392
          %1397 = vst.msk [vmem:[%s1293] sm:$0xff] %vm626, %v1395
          %1398 = vst.msk [vmem:[%s1293 + $0x8] sm:$0xff] %vm626, %v1396
          %1399 = vst.msk [vmem:[%s1245] sm:$0xff] %vm797, %v1254
          %1400 = vst.msk [vmem:[%s1245 + $0x8] sm:$0xff] %vm797, %v1255
          %1401 = vrot.lane.b32.xlu0 %v650, 104
          %v1402 = vpop.permute.xlu0 %1401
          %1403 = vrot.lane.b32.xlu0 %v651, 104
          %v1404 = vpop.permute.xlu0 %1403
          %1405 = vrot.lane.b32.xlu0 %v646, 104
          %v1406 = vpop.permute.xlu0 %1405
          %1407 = vrot.lane.b32.xlu0 %v647, 104
          %v1408 = vpop.permute.xlu0 %1407
          %v1409 = vsel %vm626, %v1402, 0
          %v1411 = vsel %vm626, %v1404, 0
          %v1413 = vsel %vm626, %v1406, 0
          %v1415 = vsel %vm626, %v1408, 0
          %1417 = vmatprep.subr.mxu0 0.0
          %1418 = vmatpush1.xpose.msra.mxu0 %v1413
          %1419 = vmatprep.subr.mxu0 0.0
          %1420 = vmatpush1.xpose.msra.mxu0 %v1415
          %1421 = vmatprep.subr.mxu0 0.0
          %1422 = vmatpush1.xpose.msra.mxu0 0.0
          %1423 = vmatprep.subr.mxu0 0.0
          %1424 = vmatpush1.xpose.msra.mxu0 0.0
          %1425 = vmatprep.subr.mxu0 0.0
          %1426 = vmatpush1.xpose.msra.mxu0 0.0
          %1427 = vmatprep.subr.mxu0 0.0
          %1428 = vmatpush1.xpose.msra.mxu0 0.0
          %1429 = vmatprep.subr.mxu0 0.0
          %1430 = vmatpush1.xpose.msra.mxu0 0.0
          %1431 = vmatprep.subr.mxu0 0.0
          %1432 = vmatpush1.xpose.msra.mxu0 0.0
          %1433 = vmatprep.subr.mxu0 0.0
          %1434 = vmatpush1.xpose.msra.mxu0 0.0
          %1435 = vmatprep.subr.mxu0 0.0
          %1436 = vmatpush1.xpose.msra.mxu0 0.0
          %1437 = vmatprep.subr.mxu0 0.0
          %1438 = vmatpush1.xpose.msra.mxu0 0.0
          %1439 = vmatprep.subr.mxu0 0.0
          %1440 = vmatpush1.xpose.msra.mxu0 0.0
          %1441 = vmatprep.subr.mxu0 0.0
          %1442 = vmatpush1.xpose.msra.mxu0 0.0
          %1443 = vmatprep.subr.mxu0 0.0
          %1444 = vmatpush1.xpose.msra.mxu0 0.0
          %1445 = vmatprep.subr.mxu0 0.0
          %1446 = vmatpush1.xpose.msra.mxu0 0.0
          %1447 = vmatprep.subr.mxu0 0.0
          %1448 = vmatpush1.xpose.msra.mxu0 0.0
          %1449 = vmatprep.subr.mxu0 0.0
          %1450 = vmatpush1.xpose.msra.mxu0 0.0
          %1451 = vmatprep.subr.mxu0 0.0
          %1452 = vmatpush1.xpose.msra.mxu0 0.0
          %1453 = vmatprep.subr.mxu0 0.0
          %1454 = vmatpush1.xpose.msra.mxu0 0.0
          %1455 = vmatprep.subr.mxu0 0.0
          %1456 = vmatpush1.xpose.msra.mxu0 0.0
          %1457 = vmatprep.subr.mxu0 0.0
          %1458 = vmatpush1.xpose.msra.mxu0 0.0
          %1459 = vmatprep.subr.mxu0 0.0
          %1460 = vmatpush1.xpose.msra.mxu0 0.0
          %1461 = vmatprep.subr.mxu0 0.0
          %1462 = vmatpush1.xpose.msra.mxu0 0.0
          %1463 = vmatprep.subr.mxu0 0.0
          %1464 = vmatpush1.xpose.msra.mxu0 0.0
          %1465 = vmatprep.subr.mxu0 0.0
          %1466 = vmatpush1.xpose.msra.mxu0 0.0
          %1467 = vmatprep.subr.mxu0 0.0
          %1468 = vmatpush1.xpose.msra.mxu0 0.0
          %1469 = vmatprep.subr.mxu0 0.0
          %1470 = vmatpush1.xpose.msra.mxu0 0.0
          %1471 = vmatprep.subr.mxu0 0.0
          %1472 = vmatpush1.xpose.msra.mxu0 0.0
          %1473 = vmatprep.subr.mxu0 0.0
          %1474 = vmatpush1.xpose.msra.mxu0 0.0
          %1475 = vmatprep.subr.mxu0 0.0
          %1476 = vmatpush1.xpose.msra.mxu0 0.0
          %1477 = vmatprep.subr.mxu0 0.0
          %1478 = vmatpush1.xpose.msra.mxu0 0.0
          %1479 = vmatprep.subr.mxu0 0.0
          %1480 = vmatpush1.xpose.msra.mxu0 0.0
          %1481 = vmatprep.mubr.f32.mxu0 0.0
          %1482 = vmatmul.mubr.f32.gmra.mrb[0].mxu0 %v1409
          %v1483 = vpop.f32.mrb[0].mxu0
          %v1484 = vadd.f32 0.0, %v1483
          %v1485 = vpop.f32.mrb[0].mxu0
          %1486 = vmatprep.mubr.f32.mxu0 0.0
          %1487 = vmatmul.mubr.f32.gmra.mrb[0].mxu0 %v1411
          %v1488 = vpop.f32.mrb[0].mxu0
          %v1489 = vadd.f32 0.0, %v1488
          %v1490 = vpop.f32.mrb[0].mxu0
          %1491 = vdwg.mxu0
          %v1492 = vsel %vm662, %v1484, -1e+30
          %v1493 = vsel %vm663, %v1489, -1e+30
          %s1494 = scalar_lea.vmem [#allocation4], 48
          %v1495 = vld [vmem:[%s1494] sm:$0xff]
          %v1496 = vld [vmem:[%s1494 + $0x8] sm:$0xff]
          %v1497 = vsel %vm632, %v1492, -inf
          %1498 = vmax.xlane.f32.xlu0 %v1497
          %v1499 = vpop.xlane.xlu0 %1498
          %v1500 = vsel %vm632, %v1493, -inf
          %1501 = vmax.xlane.f32.xlu0 %v1500
          %v1502 = vpop.xlane.xlu0 %1501
          %v1503 = vmax.f32 %v1495, %v1499
          %v1504 = vmax.f32 %v1496, %v1502
          %v1505 = vsub.f32 %v1495, %v1503
          %v1506 = vsub.f32 %v1496, %v1504
          %v1507 = vmul.f32 %v1505, 1.442695
          %v1508 = vpow.pop %v1507
          %v1509 = vmul.f32 %v1506, 1.442695
          %v1510 = vpow.pop %v1509
          %1512 = vset.pattern.permute.xlu0 0
          %1513 = vperm.xlu0 %1512, %v1503
          %v1514 = vpop.permute.xlu0 %1513
          %1517 = vset.pattern.permute.xlu0 0
          %1518 = vperm.xlu0 %1517, %v1504
          %v1519 = vpop.permute.xlu0 %1518
          %v1521 = vsub.f32 %v1492, %v1514
          %v1522 = vsub.f32 %v1493, %v1519
          %v1523 = vmul.f32 %v1521, 1.442695
          %v1524 = vpow.pop %v1523
          %v1525 = vmul.f32 %v1522, 1.442695
          %v1526 = vpow.pop %v1525
          %s1527 = scalar_lea.vmem [#allocation5], 48
          %v1528 = vld [vmem:[%s1527] sm:$0xff]
          %v1529 = vld [vmem:[%s1527 + $0x8] sm:$0xff]
          %v1530 = vmul.f32 %v1508, %v1528
          %v1531 = vmul.f32 %v1510, %v1529
          %v1532 = vsel %vm632, %v1524, 0.0
          %1533 = vadd.xlane.f32.xlu0 %v1532
          %v1534 = vpop.xlane.xlu0 %1533
          %v1535 = vsel %vm632, %v1526, 0.0
          %1536 = vadd.xlane.f32.xlu0 %v1535
          %v1537 = vpop.xlane.xlu0 %1536
          %v1538 = vadd.f32 %v1530, %v1534
          %v1539 = vadd.f32 %v1531, %v1537
          %1540 = vst.msk [vmem:[%s1527] sm:$0xff] %vm797, %v1538
          %1541 = vst.msk [vmem:[%s1527 + $0x8] sm:$0xff] %vm797, %v1539
          %s1542 = scalar_lea.vmem [#allocation3], 48
          %v1543 = vld [vmem:[%s1542] sm:$0xff]
          %v1544 = vld [vmem:[%s1542 + $0x8] sm:$0xff]
          %1546 = vset.pattern.permute.xlu0 0
          %1547 = vperm.xlu0 %1546, %v1508
          %v1548 = vpop.permute.xlu0 %1547
          %1551 = vset.pattern.permute.xlu0 0
          %1552 = vperm.xlu0 %1551, %v1510
          %v1553 = vpop.permute.xlu0 %1552
          %v1555 = vmul.f32 %v1548, %v1543
          %v1556 = vmul.f32 %v1553, %v1544
          %1557 = vrot.lane.b32.xlu0 %v648, 104
          %v1558 = vpop.permute.xlu0 %1557
          %1559 = vrot.lane.b32.xlu0 %v649, 104
          %v1560 = vpop.permute.xlu0 %1559
          %v1564 = vsel %vm632, %v1524, 0
          %v1567 = vsel %vm632, %v1526, 0
          %1569 = vmatprep.subr.mxu0 0.0
          %1570 = vmatpush1.msra.mxu0 %v1558
          %1571 = vmatprep.subr.mxu0 0.0
          %1572 = vmatpush1.msra.mxu0 %v1560
          %1573 = vmatprep.subr.mxu0 0.0
          %1574 = vmatpush1.msra.mxu0 0.0
          %1575 = vmatprep.subr.mxu0 0.0
          %1576 = vmatpush1.msra.mxu0 0.0
          %1577 = vmatprep.subr.mxu0 0.0
          %1578 = vmatpush1.msra.mxu0 0.0
          %1579 = vmatprep.subr.mxu0 0.0
          %1580 = vmatpush1.msra.mxu0 0.0
          %1581 = vmatprep.subr.mxu0 0.0
          %1582 = vmatpush1.msra.mxu0 0.0
          %1583 = vmatprep.subr.mxu0 0.0
          %1584 = vmatpush1.msra.mxu0 0.0
          %1585 = vmatprep.subr.mxu0 0.0
          %1586 = vmatpush1.msra.mxu0 0.0
          %1587 = vmatprep.subr.mxu0 0.0
          %1588 = vmatpush1.msra.mxu0 0.0
          %1589 = vmatprep.subr.mxu0 0.0
          %1590 = vmatpush1.msra.mxu0 0.0
          %1591 = vmatprep.subr.mxu0 0.0
          %1592 = vmatpush1.msra.mxu0 0.0
          %1593 = vmatprep.subr.mxu0 0.0
          %1594 = vmatpush1.msra.mxu0 0.0
          %1595 = vmatprep.subr.mxu0 0.0
          %1596 = vmatpush1.msra.mxu0 0.0
          %1597 = vmatprep.subr.mxu0 0.0
          %1598 = vmatpush1.msra.mxu0 0.0
          %1599 = vmatprep.subr.mxu0 0.0
          %1600 = vmatpush1.msra.mxu0 0.0
          %1601 = vmatprep.subr.mxu0 0.0
          %1602 = vmatpush1.msra.mxu0 0.0
          %1603 = vmatprep.subr.mxu0 0.0
          %1604 = vmatpush1.msra.mxu0 0.0
          %1605 = vmatprep.subr.mxu0 0.0
          %1606 = vmatpush1.msra.mxu0 0.0
          %1607 = vmatprep.subr.mxu0 0.0
          %1608 = vmatpush1.msra.mxu0 0.0
          %1609 = vmatprep.subr.mxu0 0.0
          %1610 = vmatpush1.msra.mxu0 0.0
          %1611 = vmatprep.subr.mxu0 0.0
          %1612 = vmatpush1.msra.mxu0 0.0
          %1613 = vmatprep.subr.mxu0 0.0
          %1614 = vmatpush1.msra.mxu0 0.0
          %1615 = vmatprep.subr.mxu0 0.0
          %1616 = vmatpush1.msra.mxu0 0.0
          %1617 = vmatprep.subr.mxu0 0.0
          %1618 = vmatpush1.msra.mxu0 0.0
          %1619 = vmatprep.subr.mxu0 0.0
          %1620 = vmatpush1.msra.mxu0 0.0
          %1621 = vmatprep.subr.mxu0 0.0
          %1622 = vmatpush1.msra.mxu0 0.0
          %1623 = vmatprep.subr.mxu0 0.0
          %1624 = vmatpush1.msra.mxu0 0.0
          %1625 = vmatprep.subr.mxu0 0.0
          %1626 = vmatpush1.msra.mxu0 0.0
          %1627 = vmatprep.subr.mxu0 0.0
          %1628 = vmatpush1.msra.mxu0 0.0
          %1629 = vmatprep.subr.mxu0 0.0
          %1630 = vmatpush1.msra.mxu0 0.0
          %1631 = vmatprep.subr.mxu0 0.0
          %1632 = vmatpush1.msra.mxu0 0.0
          %1633 = vmatprep.mubr.f32.mxu0 0.0
          %1634 = vmatmul.mubr.f32.gmra.mrb[0].mxu0 %v1564
          %v1635 = vpop.f32.mrb[0].mxu0
          %v1636 = vadd.f32 0.0, %v1635
          %v1637 = vpop.f32.mrb[0].mxu0
          %1638 = vmatprep.mubr.f32.mxu0 0.0
          %1639 = vmatmul.mubr.f32.gmra.mrb[0].mxu0 %v1567
          %v1640 = vpop.f32.mrb[0].mxu0
          %v1641 = vadd.f32 0.0, %v1640
          %v1642 = vpop.f32.mrb[0].mxu0
          %1643 = vdwg.mxu0
          %v1644 = vadd.f32 %v1555, %v1636
          %v1645 = vadd.f32 %v1556, %v1641
          %1646 = vst.msk [vmem:[%s1542] sm:$0xff] %vm626, %v1644
          %1647 = vst.msk [vmem:[%s1542 + $0x8] sm:$0xff] %vm626, %v1645
          %1648 = vst.msk [vmem:[%s1494] sm:$0xff] %vm797, %v1503
          %1649 = vst.msk [vmem:[%s1494 + $0x8] sm:$0xff] %vm797, %v1504
        $region84: #{rotary_causal_self_attention.8} parent=47 // pred_fallthru
          _
        // Predicated region
        $region85: #{rotary_causal_self_attention.8} parent=47 // pred_check
          %p1650 = pneg %p507
        $region86: #{rotary_causal_self_attention.8} parent=47 // pred_check_branch
          %1652 = sbr.rel (%p1650) target = $region88
        $region87: #{rotary_causal_self_attention.8} parent=47 // pred_region
          %v1653 = vld [vmem:[#allocation5] sm:$0xff]
          %v1654 = vld [vmem:[#allocation5 + $0x8] sm:$0xff]
          %v1655 = vld [vmem:[#allocation5 + $0x10] sm:$0xff]
          %v1656 = vld [vmem:[#allocation5 + $0x18] sm:$0xff]
          %v1657 = vld [vmem:[#allocation5 + $0x20] sm:$0xff]
          %v1658 = vld [vmem:[#allocation5 + $0x28] sm:$0xff]
          %v1659 = vld [vmem:[#allocation5 + $0x30] sm:$0xff]
          %v1660 = vld [vmem:[#allocation5 + $0x38] sm:$0xff]
          %v1661 = vrcp.pop %v1653
          %v1662 = vrcp.pop %v1654
          %v1663 = vrcp.pop %v1655
          %v1664 = vrcp.pop %v1656
          %v1665 = vrcp.pop %v1657
          %v1666 = vrcp.pop %v1658
          %v1667 = vrcp.pop %v1659
          %v1668 = vrcp.pop %v1660
          %v1669 = vld [vmem:[#allocation3] sm:$0xff]
          %v1670 = vld [vmem:[#allocation3 + $0x8] sm:$0xff]
          %1672 = vset.pattern.permute.xlu0 0
          %1673 = vperm.xlu0 %1672, %v1661
          %v1674 = vpop.permute.xlu0 %1673
          %1677 = vset.pattern.permute.xlu0 0
          %1678 = vperm.xlu0 %1677, %v1662
          %v1679 = vpop.permute.xlu0 %1678
          %v1681 = vmul.f32 %v1669, %v1674
          %v1682 = vmul.f32 %v1670, %v1679
          %s1683 = scalar_lea.vmem [#allocation3], 16
          %v1684 = vld [vmem:[%s1683] sm:$0xff]
          %v1685 = vld [vmem:[%s1683 + $0x8] sm:$0xff]
          %1687 = vset.pattern.permute.xlu0 0
          %1688 = vperm.xlu0 %1687, %v1663
          %v1689 = vpop.permute.xlu0 %1688
          %1692 = vset.pattern.permute.xlu0 0
          %1693 = vperm.xlu0 %1692, %v1664
          %v1694 = vpop.permute.xlu0 %1693
          %v1696 = vmul.f32 %v1684, %v1689
          %v1697 = vmul.f32 %v1685, %v1694
          %s1698 = scalar_lea.vmem [#allocation3], 32
          %v1699 = vld [vmem:[%s1698] sm:$0xff]
          %v1700 = vld [vmem:[%s1698 + $0x8] sm:$0xff]
          %1702 = vset.pattern.permute.xlu0 0
          %1703 = vperm.xlu0 %1702, %v1665
          %v1704 = vpop.permute.xlu0 %1703
          %1707 = vset.pattern.permute.xlu0 0
          %1708 = vperm.xlu0 %1707, %v1666
          %v1709 = vpop.permute.xlu0 %1708
          %v1711 = vmul.f32 %v1699, %v1704
          %v1712 = vmul.f32 %v1700, %v1709
          %s1713 = scalar_lea.vmem [#allocation3], 48
          %v1714 = vld [vmem:[%s1713] sm:$0xff]
          %v1715 = vld [vmem:[%s1713 + $0x8] sm:$0xff]
          %1717 = vset.pattern.permute.xlu0 0
          %1718 = vperm.xlu0 %1717, %v1667
          %v1719 = vpop.permute.xlu0 %1718
          %1722 = vset.pattern.permute.xlu0 0
          %1723 = vperm.xlu0 %1722, %v1668
          %v1724 = vpop.permute.xlu0 %1723
          %v1726 = vmul.f32 %v1714, %v1719
          %v1727 = vmul.f32 %v1715, %v1724
          %1730 = vrot.lane.b32.xlu0 %v1696, 8
          %v1731 = vpop.permute.xlu0 %1730
          %1732 = vrot.lane.b32.xlu0 %v1697, 8
          %v1733 = vpop.permute.xlu0 %1732
          %1738 = vrot.lane.b32.xlu0 %v1711, 16
          %v1739 = vpop.permute.xlu0 %1738
          %1740 = vrot.lane.b32.xlu0 %v1712, 16
          %v1741 = vpop.permute.xlu0 %1740
          %1746 = vrot.lane.b32.xlu0 %v1726, 24
          %v1747 = vpop.permute.xlu0 %1746
          %1748 = vrot.lane.b32.xlu0 %v1727, 24
          %v1749 = vpop.permute.xlu0 %1748
          %vm1752 = vcmask 64512
          %v1753 = vsel %vm1752, %v1681, %v1731
          %v1754 = vsel %vm1752, %v1682, %v1733
          %vm1755 = vcmask 130048
          %v1756 = vsel %vm1755, %v1753, %v1739
          %v1757 = vsel %vm1755, %v1754, %v1741
          %vm1758 = vcmask 195584
          %v1759 = vsel %vm1758, %v1756, %v1747
          %v1760 = vsel %vm1758, %v1757, %v1749
          %vm1761 = vcmask 261120
          %1762 = vst.msk [vmem:[%s496] sm:$0xff] %vm1761, %v1759
          %1763 = vst.msk [vmem:[%s496 + $0x8] sm:$0xff] %vm1761, %v1760
        $region88: #{rotary_causal_self_attention.8} parent=47 // pred_fallthru
          _
        %s1764 = sand.u32 %s246, 1
        %s1765 = scalar_lea.sflag [#allocation8], %s1764
        %s1766 = sand.u32 %s246, 1
        %s1767 = smul.addr %s1766, 16
        %s1768 = scalar_lea.vmem [#allocation18], %s1767
        // Predicated region
        $region89: #{rotary_causal_self_attention.8} parent=47 // pred_check
          %p1769 = pneg %p256
        $region90: #{rotary_causal_self_attention.8} parent=47 // pred_check_branch
          %1771 = sbr.rel (%p1769) target = $region92
        $region91: #{rotary_causal_self_attention.8} parent=47 // pred_region
          %s1772 = smul.u32 2, %s35
          %s1774 = ssub.s32 256, 256
          %1775 = vsyncadd %s1765, %s1774
          %s1776 = smul.addr %s34, 2
          %s1777 = sadd.s32 %s1772, %s1776
          %s1778 = smul.addr %s1777, 128
          %s1779 = scalar_lea.hbm %s7, %s1778
          %s1780 = sshll.u32 %s1768, 4
          %s1781 = int_to_ptr.vmem [resolvable:$true] %s1780
          %1786 = dma.vmem_to_hbm [thread:$0]  %s1781, 256, %s1779, %s1765, 128, 128, 8
        $region92: #{rotary_causal_self_attention.8} parent=47 // pred_fallthru
          _
      $region48: #{rotary_causal_self_attention.8} parent=5 // pred_fallthru
        _
      %p1787 = scmp.le.s32.totalorder 2, %s24
      // Predicated region
      $region93: #{rotary_causal_self_attention.8} parent=5 // pred_check
        %p1788 = pneg %p1787
      $region94: #{rotary_causal_self_attention.8} parent=5 // pred_check_branch
        %1790 = sbr.rel (%p1788) target = $region96
      $region95: #{rotary_causal_self_attention.8} parent=5 // pred_region
        %s1791 = ssub.s32 %s24, 2
        // Predicated region
        $region97: #{rotary_causal_self_attention.8} parent=95 // pred_check
          %p1792 = pneg %p262
        $region98: #{rotary_causal_self_attention.8} parent=95 // pred_check_branch
          %1794 = sbr.rel (%p1792) target = $region100
        $region99: #{rotary_causal_self_attention.8} parent=95 // pred_region
          %s1795 = sand.u32 %s247, 1
          %s1796 = scalar_lea.sflag [#allocation8], %s1795
          %s1797 = sand.u32 %s247, 1
          %s1798 = smul.addr %s1797, 16
          %s1799 = scalar_lea.vmem [#allocation18], %s1798
          %1800 = dma.done %s1796, 256
        $region100: #{rotary_causal_self_attention.8} parent=95 // pred_fallthru
          _
      $region96: #{rotary_causal_self_attention.8} parent=5 // pred_fallthru
        _
    $region6: #{rotary_causal_self_attention.8} parent=1 // loop_footer
      %s28 = sadd.s32 1, %s24
    $region7: #{rotary_causal_self_attention.8} parent=1 // loop_footer_branch
      %23 = sbr.rel target = $region3
    $region8: #{rotary_causal_self_attention.8} parent=1 // loop_exit
      _
    %1801 = vsyncpa [#allocation7], 1
    %s1802 = scalar_lea.sflag [#allocation7], 1
    %1803 = vsyncpa %s1802, 1
    %1804 = vsyncpa [#allocation10], 1
    %s1805 = scalar_lea.sflag [#allocation10], 1
    %1806 = vsyncpa %s1805, 1
    %1807 = vsyncpa [#allocation13], 1
    %1808 = vsyncpa [#allocation16], 1
    %1809 = vsyncpa [#allocation8], 1
    %s1810 = scalar_lea.sflag [#allocation8], 1
    %1811 = vsyncpa %s1810, 1

</llo_original>
